<compile_context>
chip_gen: v5e
topology: v5e:2x2
jax: 0.10.0
libtpu: 0.0.40
codegen_flags: <defaults>
</compile_context>

<pallas_src>
import jax
import jax.numpy as jnp
from jax import lax
from jax.experimental import pallas as pl
from jax.experimental.pallas import tpu as pltpu


# --------------------------------------------------------------------------- #
# Kernel 1: attention map  sigmoid(conv2(conv1(mask)))                         #
# --------------------------------------------------------------------------- #
def _attention_kernel(mask_ref, A_ref, bias_ref, attn_ref):
    """One (batch, row-tile) block of the fused double conv + sigmoid.

    mask_ref : (1, 1, H+4, W+4) f32 VMEM   mask zero-padded by 2 (full image)
    A_ref    : (81,)            f32 SMEM   A[t*9+s] = sum_h w2[h,t] * w1[h,s]
    bias_ref : (10,)            f32 SMEM   [beta[0..8], b2],  beta[t]=sum_h w2[h,t]*b1[h]
    attn_ref : (1, TH, W)       f32 VMEM   output attention rows
    """
    TH = attn_ref.shape[1]
    W = attn_ref.shape[2]
    H = mask_ref.shape[2] - 4
    r0 = pl.multiple_of(pl.program_id(1) * TH, 8)        # first output row of tile

    # Validity of the conv2 intermediate position (row + ty - 1, col + tx - 1):
    # outside the image it is zero-padded, so its contribution must be dropped.
    row = lax.broadcasted_iota(jnp.int32, (TH, W), 0) + r0   # global output row
    col = lax.broadcasted_iota(jnp.int32, (TH, W), 1)        # output column
    yv = [row >= 1, None, row <= H - 2]                      # ty = 0, 1(always), 2
    xv = [col >= 1, None, col <= W - 2]                      # tx = 0, 1(always), 2

    acc = jnp.full((TH, W), bias_ref[9], dtype=jnp.float32)  # + conv2 bias b2
    for t in range(9):                                       # conv2 taps
        ty, tx = divmod(t, 3)
        q = jnp.full((TH, W), bias_ref[t], dtype=jnp.float32)  # + beta[t]
        for s in range(9):                                   # conv1 taps
            sy, sx = divmod(s, 3)
            # mask value at (out_row + ty - 1 + sy - 1, out_col + tx - 1 + sx - 1),
            # i.e. rows r0 + ty + sy, cols tx + sx of the 2-padded mask block.
            m = mask_ref[0, 0, pl.ds(r0 + ty + sy, TH), pl.ds(tx + sx, W)]
            q = q + A_ref[t * 9 + s] * m
        valid = None
        if ty != 1:
            valid = yv[ty]
        if tx != 1:
            valid = xv[tx] if valid is None else (valid & xv[tx])
        if valid is not None:
            q = jnp.where(valid, q, 0.0)                     # conv2 zero padding
        acc = acc + q
    attn_ref[0, :, :] = jax.nn.sigmoid(acc)


def _pick_row_tile(H, W):
    """Row-tile height for the attention kernel.

    Must divide H and be a multiple of 8 (legal (1, TH, W) output block), and is
    capped so the in-register working set (a handful of (TH, W) f32 maps) stays
    small enough to avoid heavy vreg spilling / VMEM pressure on v7x.
    """
    if H <= 8 or H % 8 != 0:
        return H                       # single tile; block dims == array dims
    target = max(8, 32768 // max(W, 1))
    best = 8
    for d in range(8, min(H, target) + 1, 8):
        if H % d == 0:
            best = d
    return best


# --------------------------------------------------------------------------- #
# Kernel 2: out = x * attention  (lane-dense over flattened H*W)               #
# --------------------------------------------------------------------------- #
def _apply_kernel(x_ref, attn_ref, out_ref):
    """x_ref/out_ref: (1, TC, THW) native dtype; attn_ref: (1, 1, THW) f32.

    Multiply in f32 in-register (v5e has no bf16 VALU); cast only on the store.
    """
    out_ref[...] = (x_ref[...].astype(jnp.float32) * attn_ref[...]).astype(out_ref.dtype)


def _pick_apply_tiles(C, HW, itemsize, block_budget=1 << 20):
    """Channel / flattened-spatial tiles for the elementwise apply kernel.

    thw is a multiple of 128 (or == HW) so stores stay unmasked lane-dense;
    tc is a multiple of 8 (or == C).  tc*thw*itemsize <= block_budget, so the
    double-buffered in+out blocks stay far inside scoped VMEM on v5e/v6e/v7x.
    Ragged edges (non-dividing tiles) are handled by the cdiv grid.
    """
    if HW <= 128:
        thw = HW
    else:
        cap = max(128, ((block_budget // (8 * itemsize)) // 128) * 128)
        thw = min((HW // 128) * 128, cap)
    max_tc = max(1, block_budget // (thw * itemsize))
    if C <= max_tc:
        tc = C
    else:
        tc = max(8, (max_tc // 8) * 8)
    return tc, thw


# --------------------------------------------------------------------------- #
# Wrapper                                                                      #
# --------------------------------------------------------------------------- #
@jax.jit
def land_use_mask_forward(x, mask, w1, b1, w2, b2):
    """x: (B, C, H, W), mask: (B, 1, H, W); conv weights in PyTorch OIHW layout."""
    B, C, H, W = x.shape
    hidden = w1.shape[0]
    HW = H * W

    # ---- weight algebra (once, outside the kernels) -------------------------
    # conv1 o conv2 fused over the hidden dim:
    #   q_t = beta[t] + sum_s A[t,s] * shift_s(mask);  a2 = b2 + sum_t zpad_shift_t(q_t)
    w1f = w1.reshape(hidden, 9).astype(jnp.float32)            # w1f[h, s]
    w2f = w2.reshape(hidden, 9).astype(jnp.float32)            # w2f[h, t]
    A = jnp.sum(w2f[:, :, None] * w1f[:, None, :], axis=0)     # (9, 9)  A[t, s]
    beta = jnp.sum(w2f * b1.astype(jnp.float32)[:, None], axis=0)          # (9,)
    A_flat = A.reshape(81)                                                  # (81,)
    bias_vec = jnp.concatenate([beta, b2.reshape(1).astype(jnp.float32)])   # (10,)

    # Zero-pad the mask by 2 so every (conv1 + conv2) tap offset is a plain read.
    mask_pad = jnp.pad(mask.astype(jnp.float32),
                       ((0, 0), (0, 0), (2, 2), (2, 2)))        # (B, 1, H+4, W+4)

    # ---- kernel 1: attention map (B, H, W) f32, row-tiled --------------------
    TH = _pick_row_tile(H, W)
    attn = pl.pallas_call(
        _attention_kernel,
        out_shape=jax.ShapeDtypeStruct((B, H, W), jnp.float32),
        grid=(B, H // TH),
        in_specs=[
            # Whole padded mask per batch element; constant across row tiles so
            # it is only re-DMA'd when the batch index changes.
            pl.BlockSpec((1, 1, H + 4, W + 4), lambda b, r: (b, 0, 0, 0)),
            pl.BlockSpec(memory_space=pltpu.MemorySpace.SMEM),
            pl.BlockSpec(memory_space=pltpu.MemorySpace.SMEM),
        ],
        out_specs=pl.BlockSpec((1, TH, W), lambda b, r: (b, r, 0)),
        compiler_params=pltpu.CompilerParams(
            dimension_semantics=("parallel", "parallel"),
            vmem_limit_bytes=32 * 1024 * 1024),
    )(mask_pad, A_flat, bias_vec)

    # ---- kernel 2: lane-dense broadcast multiply over flattened H*W ---------
    x_flat = x.reshape(B, C, HW)                # contiguous, free reshape
    attn_flat = attn.reshape(B, 1, HW)
    tc, thw = _pick_apply_tiles(C, HW, x.dtype.itemsize)

    out_flat = pl.pallas_call(
        _apply_kernel,
        out_shape=jax.ShapeDtypeStruct((B, C, HW), x.dtype),
        grid=(B, pl.cdiv(C, tc), pl.cdiv(HW, thw)),
        in_specs=[
            pl.BlockSpec((1, tc, thw), lambda b, c, w: (b, c, w)),
            pl.BlockSpec((1, 1, thw), lambda b, c, w: (b, 0, w)),
        ],
        out_specs=pl.BlockSpec((1, tc, thw), lambda b, c, w: (b, c, w)),
        compiler_params=pltpu.CompilerParams(
            dimension_semantics=("parallel", "parallel", "parallel"),
            vmem_limit_bytes=32 * 1024 * 1024),
    )(x_flat, attn_flat)

    return {"features": out_flat.reshape(B, C, H, W)}


# --------------------------------------------------------------------------- #
# Pure-JAX reference + self test                                               #
# --------------------------------------------------------------------------- #
def _reference_forward(x, mask, w1, b1, w2, b2):
    """Pure-JAX reference mirroring the PyTorch module."""
    dn = ("NCHW", "OIHW", "NCHW")
    a1 = lax.conv_general_dilated(mask, w1, (1, 1), "SAME",
                                  dimension_numbers=dn,
                                  precision=lax.Precision.HIGHEST)
    a1 = a1 + b1[None, :, None, None]
    a2 = lax.conv_general_dilated(a1, w2, (1, 1), "SAME",
                                  dimension_numbers=dn,
                                  precision=lax.Precision.HIGHEST)
    a2 = a2 + b2[None, :, None, None]
    return x * jax.nn.sigmoid(a2)


if __name__ == "__main__":
    # conv1 is applied to the 1-channel mask (in_channels=1); x carries C=4.
    B, C, H, W = 2, 4, 16, 16
    hidden = 16

    key = jax.random.PRNGKey(0)
    kx, km, kw1, kb1, kw2, kb2 = jax.random.split(key, 6)

    x = jax.random.normal(kx, (B, C, H, W), dtype=jnp.float32)
    mask = jax.random.uniform(km, (B, 1, H, W), dtype=jnp.float32)

    # Deterministic PyTorch-style uniform init: bound = 1/sqrt(fan_in).
    bound1 = 1.0 / (1 * 3 * 3) ** 0.5
    w1 = jax.random.uniform(kw1, (hidden, 1, 3, 3), jnp.float32, -bound1, bound1)
    b1 = jax.random.uniform(kb1, (hidden,), jnp.float32, -bound1, bound1)
    bound2 = 1.0 / (hidden * 3 * 3) ** 0.5
    w2 = jax.random.uniform(kw2, (1, hidden, 3, 3), jnp.float32, -bound2, bound2)
    b2 = jax.random.uniform(kb2, (1,), jnp.float32, -bound2, bound2)

    out = land_use_mask_forward(x, mask, w1, b1, w2, b2)
    feats = jax.block_until_ready(out["features"])

    ref = jax.block_until_ready(_reference_forward(x, mask, w1, b1, w2, b2))

    assert feats.shape == (B, C, H, W)
    assert feats.dtype == x.dtype
    err = float(jnp.max(jnp.abs(feats - ref)))
    assert jnp.allclose(feats, ref, rtol=1e-4, atol=1e-4), err

    print("KERNEL_OK")
</pallas_src>

<mosaic_0001>
module attributes {stable_mosaic.version = 11 : i64} {
  func.func @_apply_kernel(%arg0: i32, %arg1: i32, %arg2: i32, %arg3: memref<1x4x256xf32, #tpu.memory_space<vmem>>, %arg4: memref<1x1x256xf32, #tpu.memory_space<vmem>>, %arg5: memref<1x4x256xf32, #tpu.memory_space<vmem>>) attributes {dimension_semantics = [#tpu.dimension_semantics<parallel>, #tpu.dimension_semantics<parallel>, #tpu.dimension_semantics<parallel>], iteration_bounds = array<i64: 2, 1, 1>, scalar_prefetch = 0 : i64, scratch_operands = 0 : i64, tpu.core_type = #tpu.core_type<tc>, window_params = [{transform_indices = @transform_0, window_bounds = array<i64: 1, 4, 256>}, {transform_indices = @transform_1, window_bounds = array<i64: 1, 1, 256>}, {transform_indices = @transform_2, window_bounds = array<i64: 1, 4, 256>}]} {
    %c0 = arith.constant 0 : index
    %c0_0 = arith.constant 0 : index
    %c0_1 = arith.constant 0 : index
    %0 = vector.load %arg3[%c0, %c0_0, %c0_1] : memref<1x4x256xf32, #tpu.memory_space<vmem>>, vector<1x4x256xf32>
    %c0_2 = arith.constant 0 : index
    %c0_3 = arith.constant 0 : index
    %c0_4 = arith.constant 0 : index
    %1 = vector.load %arg4[%c0_2, %c0_3, %c0_4] : memref<1x1x256xf32, #tpu.memory_space<vmem>>, vector<1x1x256xf32>
    %2 = vector.broadcast %1 : vector<1x1x256xf32> to vector<1x4x256xf32>
    %3 = arith.mulf %0, %2 : vector<1x4x256xf32>
    %c0_5 = arith.constant 0 : index
    %c0_6 = arith.constant 0 : index
    %c0_7 = arith.constant 0 : index
    %4 = vector.load %arg5[%c0_5, %c0_6, %c0_7] : memref<1x4x256xf32, #tpu.memory_space<vmem>>, vector<1x4x256xf32>
    tpu.vector_store %arg5[%c0_5, %c0_6, %c0_7], %3 {strides = array<i32>} : memref<1x4x256xf32, #tpu.memory_space<vmem>>, vector<1x4x256xf32>,
    return
  }
  func.func @transform_0(%arg0: i32, %arg1: i32, %arg2: i32) -> (i32, i32, i32) {
    %c0_i32 = arith.constant 0 : i32
    return %arg0, %arg1, %arg2 : i32, i32, i32
  }
  func.func @transform_1(%arg0: i32, %arg1: i32, %arg2: i32) -> (i32, i32, i32) {
    %c0_i32 = arith.constant 0 : i32
    %c0_i32_0 = arith.constant 0 : i32
    return %arg0, %c0_i32, %arg2 : i32, i32, i32
  }
  func.func @transform_2(%arg0: i32, %arg1: i32, %arg2: i32) -> (i32, i32, i32) {
    %c0_i32 = arith.constant 0 : i32
    return %arg0, %arg1, %arg2 : i32, i32, i32
  }
}

module attributes {stable_mosaic.version = 11 : i64} {
  func.func @_attention_kernel(%arg0: i32, %arg1: i32, %arg2: memref<1x1x20x20xf32, #tpu.memory_space<vmem>>, %arg3: memref<81xf32, #tpu.memory_space<smem>>, %arg4: memref<10xf32, #tpu.memory_space<smem>>, %arg5: memref<1x16x16xf32, #tpu.memory_space<vmem>>) attributes {dimension_semantics = [#tpu.dimension_semantics<parallel>, #tpu.dimension_semantics<parallel>], iteration_bounds = array<i64: 2, 1>, scalar_prefetch = 0 : i64, scratch_operands = 0 : i64, tpu.core_type = #tpu.core_type<tc>, window_params = [{transform_indices = @transform_0, window_bounds = array<i64: 1, 1, 20, 20>}, {transform_indices = @transform_1, window_bounds = array<i64: 81>}, {transform_indices = @transform_2, window_bounds = array<i64: 10>}, {transform_indices = @transform_3, window_bounds = array<i64: 1, 16, 16>}]} {
    %c16_i32 = arith.constant 16 : i32
    %0 = arith.muli %arg1, %c16_i32 : i32
    %1 = tpu.assume_multiple %0, 8 : i32
    %2 = tpu.iota {dimensions = array<i32: 0>} : vector<16x16xi32>
    %3 = vector.broadcast %1 : i32 to vector<16x16xi32>
    %4 = arith.addi %2, %3 : vector<16x16xi32>
    %5 = tpu.iota {dimensions = array<i32: 1>} : vector<16x16xi32>
    %c1_i32 = arith.constant 1 : i32
    %6 = vector.broadcast %c1_i32 : i32 to vector<16x16xi32>
    %7 = arith.cmpi sge, %4, %6 : vector<16x16xi32>
    %c14_i32 = arith.constant 14 : i32
    %8 = vector.broadcast %c14_i32 : i32 to vector<16x16xi32>
    %9 = arith.cmpi sle, %4, %8 : vector<16x16xi32>
    %c1_i32_0 = arith.constant 1 : i32
    %10 = vector.broadcast %c1_i32_0 : i32 to vector<16x16xi32>
    %11 = arith.cmpi sge, %5, %10 : vector<16x16xi32>
    %c14_i32_1 = arith.constant 14 : i32
    %12 = vector.broadcast %c14_i32_1 : i32 to vector<16x16xi32>
    %13 = arith.cmpi sle, %5, %12 : vector<16x16xi32>
    %c9 = arith.constant 9 : index
    %14 = memref.load %arg4[%c9] : memref<10xf32, #tpu.memory_space<smem>>
    %15 = vector.broadcast %14 : f32 to vector<16x16xf32>
    %c0 = arith.constant 0 : index
    %16 = memref.load %arg4[%c0] : memref<10xf32, #tpu.memory_space<smem>>
    %17 = vector.broadcast %16 : f32 to vector<16x16xf32>
    %c0_i32 = arith.constant 0 : i32
    %18 = arith.addi %1, %c0_i32 : i32
    %c0_i32_2 = arith.constant 0 : i32
    %19 = arith.addi %18, %c0_i32_2 : i32
    %c0_3 = arith.constant 0 : index
    %c0_4 = arith.constant 0 : index
    %20 = arith.index_cast %19 : i32 to index
    %c0_5 = arith.constant 0 : index
    %21 = vector.load %arg2[%c0_3, %c0_4, %20, %c0_5] : memref<1x1x20x20xf32, #tpu.memory_space<vmem>>, vector<1x1x16x16xf32>
    %22 = vector.shape_cast %21 : vector<1x1x16x16xf32> to vector<16x16xf32>
    %c0_6 = arith.constant 0 : index
    %23 = memref.load %arg3[%c0_6] : memref<81xf32, #tpu.memory_space<smem>>
    %24 = vector.broadcast %23 : f32 to vector<16x16xf32>
    %25 = arith.mulf %24, %22 : vector<16x16xf32>
    %26 = arith.addf %17, %25 : vector<16x16xf32>
    %c0_i32_7 = arith.constant 0 : i32
    %27 = arith.addi %1, %c0_i32_7 : i32
    %c0_i32_8 = arith.constant 0 : i32
    %28 = arith.addi %27, %c0_i32_8 : i32
    %c0_9 = arith.constant 0 : index
    %c0_10 = arith.constant 0 : index
    %29 = arith.index_cast %28 : i32 to index
    %c1 = arith.constant 1 : index
    %30 = vector.load %arg2[%c0_9, %c0_10, %29, %c1] : memref<1x1x20x20xf32, #tpu.memory_space<vmem>>, vector<1x1x16x16xf32>
    %31 = vector.shape_cast %30 : vector<1x1x16x16xf32> to vector<16x16xf32>
    %c1_11 = arith.constant 1 : index
    %32 = memref.load %arg3[%c1_11] : memref<81xf32, #tpu.memory_space<smem>>
    %33 = vector.broadcast %32 : f32 to vector<16x16xf32>
    %34 = arith.mulf %33, %31 : vector<16x16xf32>
    %35 = arith.addf %26, %34 : vector<16x16xf32>
    %c0_i32_12 = arith.constant 0 : i32
    %36 = arith.addi %1, %c0_i32_12 : i32
    %c0_i32_13 = arith.constant 0 : i32
    %37 = arith.addi %36, %c0_i32_13 : i32
    %c0_14 = arith.constant 0 : index
    %c0_15 = arith.constant 0 : index
    %38 = arith.index_cast %37 : i32 to index
    %c2 = arith.constant 2 : index
    %39 = vector.load %arg2[%c0_14, %c0_15, %38, %c2] : memref<1x1x20x20xf32, #tpu.memory_space<vmem>>, vector<1x1x16x16xf32>
    %40 = vector.shape_cast %39 : vector<1x1x16x16xf32> to vector<16x16xf32>
    %c2_16 = arith.constant 2 : index
    %41 = memref.load %arg3[%c2_16] : memref<81xf32, #tpu.memory_space<smem>>
    %42 = vector.broadcast %41 : f32 to vector<16x16xf32>
    %43 = arith.mulf %42, %40 : vector<16x16xf32>
    %44 = arith.addf %35, %43 : vector<16x16xf32>
    %c0_i32_17 = arith.constant 0 : i32
    %45 = arith.addi %1, %c0_i32_17 : i32
    %c1_i32_18 = arith.constant 1 : i32
    %46 = arith.addi %45, %c1_i32_18 : i32
    %c0_19 = arith.constant 0 : index
    %c0_20 = arith.constant 0 : index
    %47 = arith.index_cast %46 : i32 to index
    %c0_21 = arith.constant 0 : index
    %48 = vector.load %arg2[%c0_19, %c0_20, %47, %c0_21] : memref<1x1x20x20xf32, #tpu.memory_space<vmem>>, vector<1x1x16x16xf32>
    %49 = vector.shape_cast %48 : vector<1x1x16x16xf32> to vector<16x16xf32>
    %c3 = arith.constant 3 : index
    %50 = memref.load %arg3[%c3] : memref<81xf32, #tpu.memory_space<smem>>
    %51 = vector.broadcast %50 : f32 to vector<16x16xf32>
    %52 = arith.mulf %51, %49 : vector<16x16xf32>
    %53 = arith.addf %44, %52 : vector<16x16xf32>
    %c0_i32_22 = arith.constant 0 : i32
    %54 = arith.addi %1, %c0_i32_22 : i32
    %c1_i32_23 = arith.constant 1 : i32
    %55 = arith.addi %54, %c1_i32_23 : i32
    %c0_24 = arith.constant 0 : index
    %c0_25 = arith.constant 0 : index
    %56 = arith.index_cast %55 : i32 to index
    %c1_26 = arith.constant 1 : index
    %57 = vector.load %arg2[%c0_24, %c0_25, %56, %c1_26] : memref<1x1x20x20xf32, #tpu.memory_space<vmem>>, vector<1x1x16x16xf32>
    %58 = vector.shape_cast %57 : vector<1x1x16x16xf32> to vector<16x16xf32>
    %c4 = arith.constant 4 : index
    %59 = memref.load %arg3[%c4] : memref<81xf32, #tpu.memory_space<smem>>
    %60 = vector.broadcast %59 : f32 to vector<16x16xf32>
    %61 = arith.mulf %60, %58 : vector<16x16xf32>
    %62 = arith.addf %53, %61 : vector<16x16xf32>
    %c0_i32_27 = arith.constant 0 : i32
    %63 = arith.addi %1, %c0_i32_27 : i32
    %c1_i32_28 = arith.constant 1 : i32
    %64 = arith.addi %63, %c1_i32_28 : i32
    %c0_29 = arith.constant 0 : index
    %c0_30 = arith.constant 0 : index
    %65 = arith.index_cast %64 : i32 to index
    %c2_31 = arith.constant 2 : index
    %66 = vector.load %arg2[%c0_29, %c0_30, %65, %c2_31] : memref<1x1x20x20xf32, #tpu.memory_space<vmem>>, vector<1x1x16x16xf32>
    %67 = vector.shape_cast %66 : vector<1x1x16x16xf32> to vector<16x16xf32>
    %c5 = arith.constant 5 : index
    %68 = memref.load %arg3[%c5] : memref<81xf32, #tpu.memory_space<smem>>
    %69 = vector.broadcast %68 : f32 to vector<16x16xf32>
    %70 = arith.mulf %69, %67 : vector<16x16xf32>
    %71 = arith.addf %62, %70 : vector<16x16xf32>
    %c0_i32_32 = arith.constant 0 : i32
    %72 = arith.addi %1, %c0_i32_32 : i32
    %c2_i32 = arith.constant 2 : i32
    %73 = arith.addi %72, %c2_i32 : i32
    %c0_33 = arith.constant 0 : index
    %c0_34 = arith.constant 0 : index
    %74 = arith.index_cast %73 : i32 to index
    %c0_35 = arith.constant 0 : index
    %75 = vector.load %arg2[%c0_33, %c0_34, %74, %c0_35] : memref<1x1x20x20xf32, #tpu.memory_space<vmem>>, vector<1x1x16x16xf32>
    %76 = vector.shape_cast %75 : vector<1x1x16x16xf32> to vector<16x16xf32>
    %c6 = arith.constant 6 : index
    %77 = memref.load %arg3[%c6] : memref<81xf32, #tpu.memory_space<smem>>
    %78 = vector.broadcast %77 : f32 to vector<16x16xf32>
    %79 = arith.mulf %78, %76 : vector<16x16xf32>
    %80 = arith.addf %71, %79 : vector<16x16xf32>
    %c0_i32_36 = arith.constant 0 : i32
    %81 = arith.addi %1, %c0_i32_36 : i32
    %c2_i32_37 = arith.constant 2 : i32
    %82 = arith.addi %81, %c2_i32_37 : i32
    %c0_38 = arith.constant 0 : index
    %c0_39 = arith.constant 0 : index
    %83 = arith.index_cast %82 : i32 to index
    %c1_40 = arith.constant 1 : index
    %84 = vector.load %arg2[%c0_38, %c0_39, %83, %c1_40] : memref<1x1x20x20xf32, #tpu.memory_space<vmem>>, vector<1x1x16x16xf32>
    %85 = vector.shape_cast %84 : vector<1x1x16x16xf32> to vector<16x16xf32>
    %c7 = arith.constant 7 : index
    %86 = memref.load %arg3[%c7] : memref<81xf32, #tpu.memory_space<smem>>
    %87 = vector.broadcast %86 : f32 to vector<16x16xf32>
    %88 = arith.mulf %87, %85 : vector<16x16xf32>
    %89 = arith.addf %80, %88 : vector<16x16xf32>
    %c0_i32_41 = arith.constant 0 : i32
    %90 = arith.addi %1, %c0_i32_41 : i32
    %c2_i32_42 = arith.constant 2 : i32
    %91 = arith.addi %90, %c2_i32_42 : i32
    %c0_43 = arith.constant 0 : index
    %c0_44 = arith.constant 0 : index
    %92 = arith.index_cast %91 : i32 to index
    %c2_45 = arith.constant 2 : index
    %93 = vector.load %arg2[%c0_43, %c0_44, %92, %c2_45] : memref<1x1x20x20xf32, #tpu.memory_space<vmem>>, vector<1x1x16x16xf32>
    %94 = vector.shape_cast %93 : vector<1x1x16x16xf32> to vector<16x16xf32>
    %c8 = arith.constant 8 : index
    %95 = memref.load %arg3[%c8] : memref<81xf32, #tpu.memory_space<smem>>
    %96 = vector.broadcast %95 : f32 to vector<16x16xf32>
    %97 = arith.mulf %96, %94 : vector<16x16xf32>
    %98 = arith.addf %89, %97 : vector<16x16xf32>
    %99 = arith.andi %7, %11 : vector<16x16xi1>
    %cst = arith.constant 0.000000e+00 : f32
    %100 = vector.broadcast %cst : f32 to vector<16x16xf32>
    %101 = arith.select %99, %98, %100 : vector<16x16xi1>, vector<16x16xf32>
    %102 = arith.addf %15, %101 : vector<16x16xf32>
    %c1_46 = arith.constant 1 : index
    %103 = memref.load %arg4[%c1_46] : memref<10xf32, #tpu.memory_space<smem>>
    %104 = vector.broadcast %103 : f32 to vector<16x16xf32>
    %c0_i32_47 = arith.constant 0 : i32
    %105 = arith.addi %1, %c0_i32_47 : i32
    %c0_i32_48 = arith.constant 0 : i32
    %106 = arith.addi %105, %c0_i32_48 : i32
    %c0_49 = arith.constant 0 : index
    %c0_50 = arith.constant 0 : index
    %107 = arith.index_cast %106 : i32 to index
    %c1_51 = arith.constant 1 : index
    %108 = vector.load %arg2[%c0_49, %c0_50, %107, %c1_51] : memref<1x1x20x20xf32, #tpu.memory_space<vmem>>, vector<1x1x16x16xf32>
    %109 = vector.shape_cast %108 : vector<1x1x16x16xf32> to vector<16x16xf32>
    %c9_52 = arith.constant 9 : index
    %110 = memref.load %arg3[%c9_52] : memref<81xf32, #tpu.memory_space<smem>>
    %111 = vector.broadcast %110 : f32 to vector<16x16xf32>
    %112 = arith.mulf %111, %109 : vector<16x16xf32>
    %113 = arith.addf %104, %112 : vector<16x16xf32>
    %c0_i32_53 = arith.constant 0 : i32
    %114 = arith.addi %1, %c0_i32_53 : i32
    %c0_i32_54 = arith.constant 0 : i32
    %115 = arith.addi %114, %c0_i32_54 : i32
    %c0_55 = arith.constant 0 : index
    %c0_56 = arith.constant 0 : index
    %116 = arith.index_cast %115 : i32 to index
    %c2_57 = arith.constant 2 : index
    %117 = vector.load %arg2[%c0_55, %c0_56, %116, %c2_57] : memref<1x1x20x20xf32, #tpu.memory_space<vmem>>, vector<1x1x16x16xf32>
    %118 = vector.shape_cast %117 : vector<1x1x16x16xf32> to vector<16x16xf32>
    %c10 = arith.constant 10 : index
    %119 = memref.load %arg3[%c10] : memref<81xf32, #tpu.memory_space<smem>>
    %120 = vector.broadcast %119 : f32 to vector<16x16xf32>
    %121 = arith.mulf %120, %118 : vector<16x16xf32>
    %122 = arith.addf %113, %121 : vector<16x16xf32>
    %c0_i32_58 = arith.constant 0 : i32
    %123 = arith.addi %1, %c0_i32_58 : i32
    %c0_i32_59 = arith.constant 0 : i32
    %124 = arith.addi %123, %c0_i32_59 : i32
    %c0_60 = arith.constant 0 : index
    %c0_61 = arith.constant 0 : index
    %125 = arith.index_cast %124 : i32 to index
    %c3_62 = arith.constant 3 : index
    %126 = vector.load %arg2[%c0_60, %c0_61, %125, %c3_62] : memref<1x1x20x20xf32, #tpu.memory_space<vmem>>, vector<1x1x16x16xf32>
    %127 = vector.shape_cast %126 : vector<1x1x16x16xf32> to vector<16x16xf32>
    %c11 = arith.constant 11 : index
    %128 = memref.load %arg3[%c11] : memref<81xf32, #tpu.memory_space<smem>>
    %129 = vector.broadcast %128 : f32 to vector<16x16xf32>
    %130 = arith.mulf %129, %127 : vector<16x16xf32>
    %131 = arith.addf %122, %130 : vector<16x16xf32>
    %c0_i32_63 = arith.constant 0 : i32
    %132 = arith.addi %1, %c0_i32_63 : i32
    %c1_i32_64 = arith.constant 1 : i32
    %133 = arith.addi %132, %c1_i32_64 : i32
    %c0_65 = arith.constant 0 : index
    %c0_66 = arith.constant 0 : index
    %134 = arith.index_cast %133 : i32 to index
    %c1_67 = arith.constant 1 : index
    %135 = vector.load %arg2[%c0_65, %c0_66, %134, %c1_67] : memref<1x1x20x20xf32, #tpu.memory_space<vmem>>, vector<1x1x16x16xf32>
    %136 = vector.shape_cast %135 : vector<1x1x16x16xf32> to vector<16x16xf32>
    %c12 = arith.constant 12 : index
    %137 = memref.load %arg3[%c12] : memref<81xf32, #tpu.memory_space<smem>>
    %138 = vector.broadcast %137 : f32 to vector<16x16xf32>
    %139 = arith.mulf %138, %136 : vector<16x16xf32>
    %140 = arith.addf %131, %139 : vector<16x16xf32>
    %c0_i32_68 = arith.constant 0 : i32
    %141 = arith.addi %1, %c0_i32_68 : i32
    %c1_i32_69 = arith.constant 1 : i32
    %142 = arith.addi %141, %c1_i32_69 : i32
    %c0_70 = arith.constant 0 : index
    %c0_71 = arith.constant 0 : index
    %143 = arith.index_cast %142 : i32 to index
    %c2_72 = arith.constant 2 : index
    %144 = vector.load %arg2[%c0_70, %c0_71, %143, %c2_72] : memref<1x1x20x20xf32, #tpu.memory_space<vmem>>, vector<1x1x16x16xf32>
    %145 = vector.shape_cast %144 : vector<1x1x16x16xf32> to vector<16x16xf32>
    %c13 = arith.constant 13 : index
    %146 = memref.load %arg3[%c13] : memref<81xf32, #tpu.memory_space<smem>>
    %147 = vector.broadcast %146 : f32 to vector<16x16xf32>
    %148 = arith.mulf %147, %145 : vector<16x16xf32>
    %149 = arith.addf %140, %148 : vector<16x16xf32>
    %c0_i32_73 = arith.constant 0 : i32
    %150 = arith.addi %1, %c0_i32_73 : i32
    %c1_i32_74 = arith.constant 1 : i32
    %151 = arith.addi %150, %c1_i32_74 : i32
    %c0_75 = arith.constant 0 : index
    %c0_76 = arith.constant 0 : index
    %152 = arith.index_cast %151 : i32 to index
    %c3_77 = arith.constant 3 : index
    %153 = vector.load %arg2[%c0_75, %c0_76, %152, %c3_77] : memref<1x1x20x20xf32, #tpu.memory_space<vmem>>, vector<1x1x16x16xf32>
    %154 = vector.shape_cast %153 : vector<1x1x16x16xf32> to vector<16x16xf32>
    %c14 = arith.constant 14 : index
    %155 = memref.load %arg3[%c14] : memref<81xf32, #tpu.memory_space<smem>>
    %156 = vector.broadcast %155 : f32 to vector<16x16xf32>
    %157 = arith.mulf %156, %154 : vector<16x16xf32>
    %158 = arith.addf %149, %157 : vector<16x16xf32>
    %c0_i32_78 = arith.constant 0 : i32
    %159 = arith.addi %1, %c0_i32_78 : i32
    %c2_i32_79 = arith.constant 2 : i32
    %160 = arith.addi %159, %c2_i32_79 : i32
    %c0_80 = arith.constant 0 : index
    %c0_81 = arith.constant 0 : index
    %161 = arith.index_cast %160 : i32 to index
    %c1_82 = arith.constant 1 : index
    %162 = vector.load %arg2[%c0_80, %c0_81, %161, %c1_82] : memref<1x1x20x20xf32, #tpu.memory_space<vmem>>, vector<1x1x16x16xf32>
    %163 = vector.shape_cast %162 : vector<1x1x16x16xf32> to vector<16x16xf32>
    %c15 = arith.constant 15 : index
    %164 = memref.load %arg3[%c15] : memref<81xf32, #tpu.memory_space<smem>>
    %165 = vector.broadcast %164 : f32 to vector<16x16xf32>
    %166 = arith.mulf %165, %163 : vector<16x16xf32>
    %167 = arith.addf %158, %166 : vector<16x16xf32>
    %c0_i32_83 = arith.constant 0 : i32
    %168 = arith.addi %1, %c0_i32_83 : i32
    %c2_i32_84 = arith.constant 2 : i32
    %169 = arith.addi %168, %c2_i32_84 : i32
    %c0_85 = arith.constant 0 : index
    %c0_86 = arith.constant 0 : index
    %170 = arith.index_cast %169 : i32 to index
    %c2_87 = arith.constant 2 : index
    %171 = vector.load %arg2[%c0_85, %c0_86, %170, %c2_87] : memref<1x1x20x20xf32, #tpu.memory_space<vmem>>, vector<1x1x16x16xf32>
    %172 = vector.shape_cast %171 : vector<1x1x16x16xf32> to vector<16x16xf32>
    %c16 = arith.constant 16 : index
    %173 = memref.load %arg3[%c16] : memref<81xf32, #tpu.memory_space<smem>>
    %174 = vector.broadcast %173 : f32 to vector<16x16xf32>
    %175 = arith.mulf %174, %172 : vector<16x16xf32>
    %176 = arith.addf %167, %175 : vector<16x16xf32>
    %c0_i32_88 = arith.constant 0 : i32
    %177 = arith.addi %1, %c0_i32_88 : i32
    %c2_i32_89 = arith.constant 2 : i32
    %178 = arith.addi %177, %c2_i32_89 : i32
    %c0_90 = arith.constant 0 : index
    %c0_91 = arith.constant 0 : index
    %179 = arith.index_cast %178 : i32 to index
    %c3_92 = arith.constant 3 : index
    %180 = vector.load %arg2[%c0_90, %c0_91, %179, %c3_92] : memref<1x1x20x20xf32, #tpu.memory_space<vmem>>, vector<1x1x16x16xf32>
    %181 = vector.shape_cast %180 : vector<1x1x16x16xf32> to vector<16x16xf32>
    %c17 = arith.constant 17 : index
    %182 = memref.load %arg3[%c17] : memref<81xf32, #tpu.memory_space<smem>>
    %183 = vector.broadcast %182 : f32 to vector<16x16xf32>
    %184 = arith.mulf %183, %181 : vector<16x16xf32>
    %185 = arith.addf %176, %184 : vector<16x16xf32>
    %cst_93 = arith.constant 0.000000e+00 : f32
    %186 = vector.broadcast %cst_93 : f32 to vector<16x16xf32>
    %187 = arith.select %7, %185, %186 : vector<16x16xi1>, vector<16x16xf32>
    %188 = arith.addf %102, %187 : vector<16x16xf32>
    %c2_94 = arith.constant 2 : index
    %189 = memref.load %arg4[%c2_94] : memref<10xf32, #tpu.memory_space<smem>>
    %190 = vector.broadcast %189 : f32 to vector<16x16xf32>
    %c0_i32_95 = arith.constant 0 : i32
    %191 = arith.addi %1, %c0_i32_95 : i32
    %c0_i32_96 = arith.constant 0 : i32
    %192 = arith.addi %191, %c0_i32_96 : i32
    %c0_97 = arith.constant 0 : index
    %c0_98 = arith.constant 0 : index
    %193 = arith.index_cast %192 : i32 to index
    %c2_99 = arith.constant 2 : index
    %194 = vector.load %arg2[%c0_97, %c0_98, %193, %c2_99] : memref<1x1x20x20xf32, #tpu.memory_space<vmem>>, vector<1x1x16x16xf32>
    %195 = vector.shape_cast %194 : vector<1x1x16x16xf32> to vector<16x16xf32>
    %c18 = arith.constant 18 : index
    %196 = memref.load %arg3[%c18] : memref<81xf32, #tpu.memory_space<smem>>
    %197 = vector.broadcast %196 : f32 to vector<16x16xf32>
    %198 = arith.mulf %197, %195 : vector<16x16xf32>
    %199 = arith.addf %190, %198 : vector<16x16xf32>
    %c0_i32_100 = arith.constant 0 : i32
    %200 = arith.addi %1, %c0_i32_100 : i32
    %c0_i32_101 = arith.constant 0 : i32
    %201 = arith.addi %200, %c0_i32_101 : i32
    %c0_102 = arith.constant 0 : index
    %c0_103 = arith.constant 0 : index
    %202 = arith.index_cast %201 : i32 to index
    %c3_104 = arith.constant 3 : index
    %203 = vector.load %arg2[%c0_102, %c0_103, %202, %c3_104] : memref<1x1x20x20xf32, #tpu.memory_space<vmem>>, vector<1x1x16x16xf32>
    %204 = vector.shape_cast %203 : vector<1x1x16x16xf32> to vector<16x16xf32>
    %c19 = arith.constant 19 : index
    %205 = memref.load %arg3[%c19] : memref<81xf32, #tpu.memory_space<smem>>
    %206 = vector.broadcast %205 : f32 to vector<16x16xf32>
    %207 = arith.mulf %206, %204 : vector<16x16xf32>
    %208 = arith.addf %199, %207 : vector<16x16xf32>
    %c0_i32_105 = arith.constant 0 : i32
    %209 = arith.addi %1, %c0_i32_105 : i32
    %c0_i32_106 = arith.constant 0 : i32
    %210 = arith.addi %209, %c0_i32_106 : i32
    %c0_107 = arith.constant 0 : index
    %c0_108 = arith.constant 0 : index
    %211 = arith.index_cast %210 : i32 to index
    %c4_109 = arith.constant 4 : index
    %212 = vector.load %arg2[%c0_107, %c0_108, %211, %c4_109] : memref<1x1x20x20xf32, #tpu.memory_space<vmem>>, vector<1x1x16x16xf32>
    %213 = vector.shape_cast %212 : vector<1x1x16x16xf32> to vector<16x16xf32>
    %c20 = arith.constant 20 : index
    %214 = memref.load %arg3[%c20] : memref<81xf32, #tpu.memory_space<smem>>
    %215 = vector.broadcast %214 : f32 to vector<16x16xf32>
    %216 = arith.mulf %215, %213 : vector<16x16xf32>
    %217 = arith.addf %208, %216 : vector<16x16xf32>
    %c0_i32_110 = arith.constant 0 : i32
    %218 = arith.addi %1, %c0_i32_110 : i32
    %c1_i32_111 = arith.constant 1 : i32
    %219 = arith.addi %218, %c1_i32_111 : i32
    %c0_112 = arith.constant 0 : index
    %c0_113 = arith.constant 0 : index
    %220 = arith.index_cast %219 : i32 to index
    %c2_114 = arith.constant 2 : index
    %221 = vector.load %arg2[%c0_112, %c0_113, %220, %c2_114] : memref<1x1x20x20xf32, #tpu.memory_space<vmem>>, vector<1x1x16x16xf32>
    %222 = vector.shape_cast %221 : vector<1x1x16x16xf32> to vector<16x16xf32>
    %c21 = arith.constant 21 : index
    %223 = memref.load %arg3[%c21] : memref<81xf32, #tpu.memory_space<smem>>
    %224 = vector.broadcast %223 : f32 to vector<16x16xf32>
    %225 = arith.mulf %224, %222 : vector<16x16xf32>
    %226 = arith.addf %217, %225 : vector<16x16xf32>
    %c0_i32_115 = arith.constant 0 : i32
    %227 = arith.addi %1, %c0_i32_115 : i32
    %c1_i32_116 = arith.constant 1 : i32
    %228 = arith.addi %227, %c1_i32_116 : i32
    %c0_117 = arith.constant 0 : index
    %c0_118 = arith.constant 0 : index
    %229 = arith.index_cast %228 : i32 to index
    %c3_119 = arith.constant 3 : index
    %230 = vector.load %arg2[%c0_117, %c0_118, %229, %c3_119] : memref<1x1x20x20xf32, #tpu.memory_space<vmem>>, vector<1x1x16x16xf32>
    %231 = vector.shape_cast %230 : vector<1x1x16x16xf32> to vector<16x16xf32>
    %c22 = arith.constant 22 : index
    %232 = memref.load %arg3[%c22] : memref<81xf32, #tpu.memory_space<smem>>
    %233 = vector.broadcast %232 : f32 to vector<16x16xf32>
    %234 = arith.mulf %233, %231 : vector<16x16xf32>
    %235 = arith.addf %226, %234 : vector<16x16xf32>
    %c0_i32_120 = arith.constant 0 : i32
    %236 = arith.addi %1, %c0_i32_120 : i32
    %c1_i32_121 = arith.constant 1 : i32
    %237 = arith.addi %236, %c1_i32_121 : i32
    %c0_122 = arith.constant 0 : index
    %c0_123 = arith.constant 0 : index
    %238 = arith.index_cast %237 : i32 to index
    %c4_124 = arith.constant 4 : index
    %239 = vector.load %arg2[%c0_122, %c0_123, %238, %c4_124] : memref<1x1x20x20xf32, #tpu.memory_space<vmem>>, vector<1x1x16x16xf32>
    %240 = vector.shape_cast %239 : vector<1x1x16x16xf32> to vector<16x16xf32>
    %c23 = arith.constant 23 : index
    %241 = memref.load %arg3[%c23] : memref<81xf32, #tpu.memory_space<smem>>
    %242 = vector.broadcast %241 : f32 to vector<16x16xf32>
    %243 = arith.mulf %242, %240 : vector<16x16xf32>
    %244 = arith.addf %235, %243 : vector<16x16xf32>
    %c0_i32_125 = arith.constant 0 : i32
    %245 = arith.addi %1, %c0_i32_125 : i32
    %c2_i32_126 = arith.constant 2 : i32
    %246 = arith.addi %245, %c2_i32_126 : i32
    %c0_127 = arith.constant 0 : index
    %c0_128 = arith.constant 0 : index
    %247 = arith.index_cast %246 : i32 to index
    %c2_129 = arith.constant 2 : index
    %248 = vector.load %arg2[%c0_127, %c0_128, %247, %c2_129] : memref<1x1x20x20xf32, #tpu.memory_space<vmem>>, vector<1x1x16x16xf32>
    %249 = vector.shape_cast %248 : vector<1x1x16x16xf32> to vector<16x16xf32>
    %c24 = arith.constant 24 : index
    %250 = memref.load %arg3[%c24] : memref<81xf32, #tpu.memory_space<smem>>
    %251 = vector.broadcast %250 : f32 to vector<16x16xf32>
    %252 = arith.mulf %251, %249 : vector<16x16xf32>
    %253 = arith.addf %244, %252 : vector<16x16xf32>
    %c0_i32_130 = arith.constant 0 : i32
    %254 = arith.addi %1, %c0_i32_130 : i32
    %c2_i32_131 = arith.constant 2 : i32
    %255 = arith.addi %254, %c2_i32_131 : i32
    %c0_132 = arith.constant 0 : index
    %c0_133 = arith.constant 0 : index
    %256 = arith.index_cast %255 : i32 to index
    %c3_134 = arith.constant 3 : index
    %257 = vector.load %arg2[%c0_132, %c0_133, %256, %c3_134] : memref<1x1x20x20xf32, #tpu.memory_space<vmem>>, vector<1x1x16x16xf32>
    %258 = vector.shape_cast %257 : vector<1x1x16x16xf32> to vector<16x16xf32>
    %c25 = arith.constant 25 : index
    %259 = memref.load %arg3[%c25] : memref<81xf32, #tpu.memory_space<smem>>
    %260 = vector.broadcast %259 : f32 to vector<16x16xf32>
    %261 = arith.mulf %260, %258 : vector<16x16xf32>
    %262 = arith.addf %253, %261 : vector<16x16xf32>
    %c0_i32_135 = arith.constant 0 : i32
    %263 = arith.addi %1, %c0_i32_135 : i32
    %c2_i32_136 = arith.constant 2 : i32
    %264 = arith.addi %263, %c2_i32_136 : i32
    %c0_137 = arith.constant 0 : index
    %c0_138 = arith.constant 0 : index
    %265 = arith.index_cast %264 : i32 to index
    %c4_139 = arith.constant 4 : index
    %266 = vector.load %arg2[%c0_137, %c0_138, %265, %c4_139] : memref<1x1x20x20xf32, #tpu.memory_space<vmem>>, vector<1x1x16x16xf32>
    %267 = vector.shape_cast %266 : vector<1x1x16x16xf32> to vector<16x16xf32>
    %c26 = arith.constant 26 : index
    %268 = memref.load %arg3[%c26] : memref<81xf32, #tpu.memory_space<smem>>
    %269 = vector.broadcast %268 : f32 to vector<16x16xf32>
    %270 = arith.mulf %269, %267 : vector<16x16xf32>
    %271 = arith.addf %262, %270 : vector<16x16xf32>
    %272 = arith.andi %7, %13 : vector<16x16xi1>
    %cst_140 = arith.constant 0.000000e+00 : f32
    %273 = vector.broadcast %cst_140 : f32 to vector<16x16xf32>
    %274 = arith.select %272, %271, %273 : vector<16x16xi1>, vector<16x16xf32>
    %275 = arith.addf %188, %274 : vector<16x16xf32>
    %c3_141 = arith.constant 3 : index
    %276 = memref.load %arg4[%c3_141] : memref<10xf32, #tpu.memory_space<smem>>
    %277 = vector.broadcast %276 : f32 to vector<16x16xf32>
    %c1_i32_142 = arith.constant 1 : i32
    %278 = arith.addi %1, %c1_i32_142 : i32
    %c0_i32_143 = arith.constant 0 : i32
    %279 = arith.addi %278, %c0_i32_143 : i32
    %c0_144 = arith.constant 0 : index
    %c0_145 = arith.constant 0 : index
    %280 = arith.index_cast %279 : i32 to index
    %c0_146 = arith.constant 0 : index
    %281 = vector.load %arg2[%c0_144, %c0_145, %280, %c0_146] : memref<1x1x20x20xf32, #tpu.memory_space<vmem>>, vector<1x1x16x16xf32>
    %282 = vector.shape_cast %281 : vector<1x1x16x16xf32> to vector<16x16xf32>
    %c27 = arith.constant 27 : index
    %283 = memref.load %arg3[%c27] : memref<81xf32, #tpu.memory_space<smem>>
    %284 = vector.broadcast %283 : f32 to vector<16x16xf32>
    %285 = arith.mulf %284, %282 : vector<16x16xf32>
    %286 = arith.addf %277, %285 : vector<16x16xf32>
    %c1_i32_147 = arith.constant 1 : i32
    %287 = arith.addi %1, %c1_i32_147 : i32
    %c0_i32_148 = arith.constant 0 : i32
    %288 = arith.addi %287, %c0_i32_148 : i32
    %c0_149 = arith.constant 0 : index
    %c0_150 = arith.constant 0 : index
    %289 = arith.index_cast %288 : i32 to index
    %c1_151 = arith.constant 1 : index
    %290 = vector.load %arg2[%c0_149, %c0_150, %289, %c1_151] : memref<1x1x20x20xf32, #tpu.memory_space<vmem>>, vector<1x1x16x16xf32>
    %291 = vector.shape_cast %290 : vector<1x1x16x16xf32> to vector<16x16xf32>
    %c28 = arith.constant 28 : index
    %292 = memref.load %arg3[%c28] : memref<81xf32, #tpu.memory_space<smem>>
    %293 = vector.broadcast %292 : f32 to vector<16x16xf32>
    %294 = arith.mulf %293, %291 : vector<16x16xf32>
    %295 = arith.addf %286, %294 : vector<16x16xf32>
    %c1_i32_152 = arith.constant 1 : i32
    %296 = arith.addi %1, %c1_i32_152 : i32
    %c0_i32_153 = arith.constant 0 : i32
    %297 = arith.addi %296, %c0_i32_153 : i32
    %c0_154 = arith.constant 0 : index
    %c0_155 = arith.constant 0 : index
    %298 = arith.index_cast %297 : i32 to index
    %c2_156 = arith.constant 2 : index
    %299 = vector.load %arg2[%c0_154, %c0_155, %298, %c2_156] : memref<1x1x20x20xf32, #tpu.memory_space<vmem>>, vector<1x1x16x16xf32>
    %300 = vector.shape_cast %299 : vector<1x1x16x16xf32> to vector<16x16xf32>
    %c29 = arith.constant 29 : index
    %301 = memref.load %arg3[%c29] : memref<81xf32, #tpu.memory_space<smem>>
    %302 = vector.broadcast %301 : f32 to vector<16x16xf32>
    %303 = arith.mulf %302, %300 : vector<16x16xf32>
    %304 = arith.addf %295, %303 : vector<16x16xf32>
    %c1_i32_157 = arith.constant 1 : i32
    %305 = arith.addi %1, %c1_i32_157 : i32
    %c1_i32_158 = arith.constant 1 : i32
    %306 = arith.addi %305, %c1_i32_158 : i32
    %c0_159 = arith.constant 0 : index
    %c0_160 = arith.constant 0 : index
    %307 = arith.index_cast %306 : i32 to index
    %c0_161 = arith.constant 0 : index
    %308 = vector.load %arg2[%c0_159, %c0_160, %307, %c0_161] : memref<1x1x20x20xf32, #tpu.memory_space<vmem>>, vector<1x1x16x16xf32>
    %309 = vector.shape_cast %308 : vector<1x1x16x16xf32> to vector<16x16xf32>
    %c30 = arith.constant 30 : index
    %310 = memref.load %arg3[%c30] : memref<81xf32, #tpu.memory_space<smem>>
    %311 = vector.broadcast %310 : f32 to vector<16x16xf32>
    %312 = arith.mulf %311, %309 : vector<16x16xf32>
    %313 = arith.addf %304, %312 : vector<16x16xf32>
    %c1_i32_162 = arith.constant 1 : i32
    %314 = arith.addi %1, %c1_i32_162 : i32
    %c1_i32_163 = arith.constant 1 : i32
    %315 = arith.addi %314, %c1_i32_163 : i32
    %c0_164 = arith.constant 0 : index
    %c0_165 = arith.constant 0 : index
    %316 = arith.index_cast %315 : i32 to index
    %c1_166 = arith.constant 1 : index
    %317 = vector.load %arg2[%c0_164, %c0_165, %316, %c1_166] : memref<1x1x20x20xf32, #tpu.memory_space<vmem>>, vector<1x1x16x16xf32>
    %318 = vector.shape_cast %317 : vector<1x1x16x16xf32> to vector<16x16xf32>
    %c31 = arith.constant 31 : index
    %319 = memref.load %arg3[%c31] : memref<81xf32, #tpu.memory_space<smem>>
    %320 = vector.broadcast %319 : f32 to vector<16x16xf32>
    %321 = arith.mulf %320, %318 : vector<16x16xf32>
    %322 = arith.addf %313, %321 : vector<16x16xf32>
    %c1_i32_167 = arith.constant 1 : i32
    %323 = arith.addi %1, %c1_i32_167 : i32
    %c1_i32_168 = arith.constant 1 : i32
    %324 = arith.addi %323, %c1_i32_168 : i32
    %c0_169 = arith.constant 0 : index
    %c0_170 = arith.constant 0 : index
    %325 = arith.index_cast %324 : i32 to index
    %c2_171 = arith.constant 2 : index
    %326 = vector.load %arg2[%c0_169, %c0_170, %325, %c2_171] : memref<1x1x20x20xf32, #tpu.memory_space<vmem>>, vector<1x1x16x16xf32>
    %327 = vector.shape_cast %326 : vector<1x1x16x16xf32> to vector<16x16xf32>
    %c32 = arith.constant 32 : index
    %328 = memref.load %arg3[%c32] : memref<81xf32, #tpu.memory_space<smem>>
    %329 = vector.broadcast %328 : f32 to vector<16x16xf32>
    %330 = arith.mulf %329, %327 : vector<16x16xf32>
    %331 = arith.addf %322, %330 : vector<16x16xf32>
    %c1_i32_172 = arith.constant 1 : i32
    %332 = arith.addi %1, %c1_i32_172 : i32
    %c2_i32_173 = arith.constant 2 : i32
    %333 = arith.addi %332, %c2_i32_173 : i32
    %c0_174 = arith.constant 0 : index
    %c0_175 = arith.constant 0 : index
    %334 = arith.index_cast %333 : i32 to index
    %c0_176 = arith.constant 0 : index
    %335 = vector.load %arg2[%c0_174, %c0_175, %334, %c0_176] : memref<1x1x20x20xf32, #tpu.memory_space<vmem>>, vector<1x1x16x16xf32>
    %336 = vector.shape_cast %335 : vector<1x1x16x16xf32> to vector<16x16xf32>
    %c33 = arith.constant 33 : index
    %337 = memref.load %arg3[%c33] : memref<81xf32, #tpu.memory_space<smem>>
    %338 = vector.broadcast %337 : f32 to vector<16x16xf32>
    %339 = arith.mulf %338, %336 : vector<16x16xf32>
    %340 = arith.addf %331, %339 : vector<16x16xf32>
    %c1_i32_177 = arith.constant 1 : i32
    %341 = arith.addi %1, %c1_i32_177 : i32
    %c2_i32_178 = arith.constant 2 : i32
    %342 = arith.addi %341, %c2_i32_178 : i32
    %c0_179 = arith.constant 0 : index
    %c0_180 = arith.constant 0 : index
    %343 = arith.index_cast %342 : i32 to index
    %c1_181 = arith.constant 1 : index
    %344 = vector.load %arg2[%c0_179, %c0_180, %343, %c1_181] : memref<1x1x20x20xf32, #tpu.memory_space<vmem>>, vector<1x1x16x16xf32>
    %345 = vector.shape_cast %344 : vector<1x1x16x16xf32> to vector<16x16xf32>
    %c34 = arith.constant 34 : index
    %346 = memref.load %arg3[%c34] : memref<81xf32, #tpu.memory_space<smem>>
    %347 = vector.broadcast %346 : f32 to vector<16x16xf32>
    %348 = arith.mulf %347, %345 : vector<16x16xf32>
    %349 = arith.addf %340, %348 : vector<16x16xf32>
    %c1_i32_182 = arith.constant 1 : i32
    %350 = arith.addi %1, %c1_i32_182 : i32
    %c2_i32_183 = arith.constant 2 : i32
    %351 = arith.addi %350, %c2_i32_183 : i32
    %c0_184 = arith.constant 0 : index
    %c0_185 = arith.constant 0 : index
    %352 = arith.index_cast %351 : i32 to index
    %c2_186 = arith.constant 2 : index
    %353 = vector.load %arg2[%c0_184, %c0_185, %352, %c2_186] : memref<1x1x20x20xf32, #tpu.memory_space<vmem>>, vector<1x1x16x16xf32>
    %354 = vector.shape_cast %353 : vector<1x1x16x16xf32> to vector<16x16xf32>
    %c35 = arith.constant 35 : index
    %355 = memref.load %arg3[%c35] : memref<81xf32, #tpu.memory_space<smem>>
    %356 = vector.broadcast %355 : f32 to vector<16x16xf32>
    %357 = arith.mulf %356, %354 : vector<16x16xf32>
    %358 = arith.addf %349, %357 : vector<16x16xf32>
    %cst_187 = arith.constant 0.000000e+00 : f32
    %359 = vector.broadcast %cst_187 : f32 to vector<16x16xf32>
    %360 = arith.select %11, %358, %359 : vector<16x16xi1>, vector<16x16xf32>
    %361 = arith.addf %275, %360 : vector<16x16xf32>
    %c4_188 = arith.constant 4 : index
    %362 = memref.load %arg4[%c4_188] : memref<10xf32, #tpu.memory_space<smem>>
    %363 = vector.broadcast %362 : f32 to vector<16x16xf32>
    %c1_i32_189 = arith.constant 1 : i32
    %364 = arith.addi %1, %c1_i32_189 : i32
    %c0_i32_190 = arith.constant 0 : i32
    %365 = arith.addi %364, %c0_i32_190 : i32
    %c0_191 = arith.constant 0 : index
    %c0_192 = arith.constant 0 : index
    %366 = arith.index_cast %365 : i32 to index
    %c1_193 = arith.constant 1 : index
    %367 = vector.load %arg2[%c0_191, %c0_192, %366, %c1_193] : memref<1x1x20x20xf32, #tpu.memory_space<vmem>>, vector<1x1x16x16xf32>
    %368 = vector.shape_cast %367 : vector<1x1x16x16xf32> to vector<16x16xf32>
    %c36 = arith.constant 36 : index
    %369 = memref.load %arg3[%c36] : memref<81xf32, #tpu.memory_space<smem>>
    %370 = vector.broadcast %369 : f32 to vector<16x16xf32>
    %371 = arith.mulf %370, %368 : vector<16x16xf32>
    %372 = arith.addf %363, %371 : vector<16x16xf32>
    %c1_i32_194 = arith.constant 1 : i32
    %373 = arith.addi %1, %c1_i32_194 : i32
    %c0_i32_195 = arith.constant 0 : i32
    %374 = arith.addi %373, %c0_i32_195 : i32
    %c0_196 = arith.constant 0 : index
    %c0_197 = arith.constant 0 : index
    %375 = arith.index_cast %374 : i32 to index
    %c2_198 = arith.constant 2 : index
    %376 = vector.load %arg2[%c0_196, %c0_197, %375, %c2_198] : memref<1x1x20x20xf32, #tpu.memory_space<vmem>>, vector<1x1x16x16xf32>
    %377 = vector.shape_cast %376 : vector<1x1x16x16xf32> to vector<16x16xf32>
    %c37 = arith.constant 37 : index
    %378 = memref.load %arg3[%c37] : memref<81xf32, #tpu.memory_space<smem>>
    %379 = vector.broadcast %378 : f32 to vector<16x16xf32>
    %380 = arith.mulf %379, %377 : vector<16x16xf32>
    %381 = arith.addf %372, %380 : vector<16x16xf32>
    %c1_i32_199 = arith.constant 1 : i32
    %382 = arith.addi %1, %c1_i32_199 : i32
    %c0_i32_200 = arith.constant 0 : i32
    %383 = arith.addi %382, %c0_i32_200 : i32
    %c0_201 = arith.constant 0 : index
    %c0_202 = arith.constant 0 : index
    %384 = arith.index_cast %383 : i32 to index
    %c3_203 = arith.constant 3 : index
    %385 = vector.load %arg2[%c0_201, %c0_202, %384, %c3_203] : memref<1x1x20x20xf32, #tpu.memory_space<vmem>>, vector<1x1x16x16xf32>
    %386 = vector.shape_cast %385 : vector<1x1x16x16xf32> to vector<16x16xf32>
    %c38 = arith.constant 38 : index
    %387 = memref.load %arg3[%c38] : memref<81xf32, #tpu.memory_space<smem>>
    %388 = vector.broadcast %387 : f32 to vector<16x16xf32>
    %389 = arith.mulf %388, %386 : vector<16x16xf32>
    %390 = arith.addf %381, %389 : vector<16x16xf32>
    %c1_i32_204 = arith.constant 1 : i32
    %391 = arith.addi %1, %c1_i32_204 : i32
    %c1_i32_205 = arith.constant 1 : i32
    %392 = arith.addi %391, %c1_i32_205 : i32
    %c0_206 = arith.constant 0 : index
    %c0_207 = arith.constant 0 : index
    %393 = arith.index_cast %392 : i32 to index
    %c1_208 = arith.constant 1 : index
    %394 = vector.load %arg2[%c0_206, %c0_207, %393, %c1_208] : memref<1x1x20x20xf32, #tpu.memory_space<vmem>>, vector<1x1x16x16xf32>
    %395 = vector.shape_cast %394 : vector<1x1x16x16xf32> to vector<16x16xf32>
    %c39 = arith.constant 39 : index
    %396 = memref.load %arg3[%c39] : memref<81xf32, #tpu.memory_space<smem>>
    %397 = vector.broadcast %396 : f32 to vector<16x16xf32>
    %398 = arith.mulf %397, %395 : vector<16x16xf32>
    %399 = arith.addf %390, %398 : vector<16x16xf32>
    %c1_i32_209 = arith.constant 1 : i32
    %400 = arith.addi %1, %c1_i32_209 : i32
    %c1_i32_210 = arith.constant 1 : i32
    %401 = arith.addi %400, %c1_i32_210 : i32
    %c0_211 = arith.constant 0 : index
    %c0_212 = arith.constant 0 : index
    %402 = arith.index_cast %401 : i32 to index
    %c2_213 = arith.constant 2 : index
    %403 = vector.load %arg2[%c0_211, %c0_212, %402, %c2_213] : memref<1x1x20x20xf32, #tpu.memory_space<vmem>>, vector<1x1x16x16xf32>
    %404 = vector.shape_cast %403 : vector<1x1x16x16xf32> to vector<16x16xf32>
    %c40 = arith.constant 40 : index
    %405 = memref.load %arg3[%c40] : memref<81xf32, #tpu.memory_space<smem>>
    %406 = vector.broadcast %405 : f32 to vector<16x16xf32>
    %407 = arith.mulf %406, %404 : vector<16x16xf32>
    %408 = arith.addf %399, %407 : vector<16x16xf32>
    %c1_i32_214 = arith.constant 1 : i32
    %409 = arith.addi %1, %c1_i32_214 : i32
    %c1_i32_215 = arith.constant 1 : i32
    %410 = arith.addi %409, %c1_i32_215 : i32
    %c0_216 = arith.constant 0 : index
    %c0_217 = arith.constant 0 : index
    %411 = arith.index_cast %410 : i32 to index
    %c3_218 = arith.constant 3 : index
    %412 = vector.load %arg2[%c0_216, %c0_217, %411, %c3_218] : memref<1x1x20x20xf32, #tpu.memory_space<vmem>>, vector<1x1x16x16xf32>
    %413 = vector.shape_cast %412 : vector<1x1x16x16xf32> to vector<16x16xf32>
    %c41 = arith.constant 41 : index
    %414 = memref.load %arg3[%c41] : memref<81xf32, #tpu.memory_space<smem>>
    %415 = vector.broadcast %414 : f32 to vector<16x16xf32>
    %416 = arith.mulf %415, %413 : vector<16x16xf32>
    %417 = arith.addf %408, %416 : vector<16x16xf32>
    %c1_i32_219 = arith.constant 1 : i32
    %418 = arith.addi %1, %c1_i32_219 : i32
    %c2_i32_220 = arith.constant 2 : i32
    %419 = arith.addi %418, %c2_i32_220 : i32
    %c0_221 = arith.constant 0 : index
    %c0_222 = arith.constant 0 : index
    %420 = arith.index_cast %419 : i32 to index
    %c1_223 = arith.constant 1 : index
    %421 = vector.load %arg2[%c0_221, %c0_222, %420, %c1_223] : memref<1x1x20x20xf32, #tpu.memory_space<vmem>>, vector<1x1x16x16xf32>
    %422 = vector.shape_cast %421 : vector<1x1x16x16xf32> to vector<16x16xf32>
    %c42 = arith.constant 42 : index
    %423 = memref.load %arg3[%c42] : memref<81xf32, #tpu.memory_space<smem>>
    %424 = vector.broadcast %423 : f32 to vector<16x16xf32>
    %425 = arith.mulf %424, %422 : vector<16x16xf32>
    %426 = arith.addf %417, %425 : vector<16x16xf32>
    %c1_i32_224 = arith.constant 1 : i32
    %427 = arith.addi %1, %c1_i32_224 : i32
    %c2_i32_225 = arith.constant 2 : i32
    %428 = arith.addi %427, %c2_i32_225 : i32
    %c0_226 = arith.constant 0 : index
    %c0_227 = arith.constant 0 : index
    %429 = arith.index_cast %428 : i32 to index
    %c2_228 = arith.constant 2 : index
    %430 = vector.load %arg2[%c0_226, %c0_227, %429, %c2_228] : memref<1x1x20x20xf32, #tpu.memory_space<vmem>>, vector<1x1x16x16xf32>
    %431 = vector.shape_cast %430 : vector<1x1x16x16xf32> to vector<16x16xf32>
    %c43 = arith.constant 43 : index
    %432 = memref.load %arg3[%c43] : memref<81xf32, #tpu.memory_space<smem>>
    %433 = vector.broadcast %432 : f32 to vector<16x16xf32>
    %434 = arith.mulf %433, %431 : vector<16x16xf32>
    %435 = arith.addf %426, %434 : vector<16x16xf32>
    %c1_i32_229 = arith.constant 1 : i32
    %436 = arith.addi %1, %c1_i32_229 : i32
    %c2_i32_230 = arith.constant 2 : i32
    %437 = arith.addi %436, %c2_i32_230 : i32
    %c0_231 = arith.constant 0 : index
    %c0_232 = arith.constant 0 : index
    %438 = arith.index_cast %437 : i32 to index
    %c3_233 = arith.constant 3 : index
    %439 = vector.load %arg2[%c0_231, %c0_232, %438, %c3_233] : memref<1x1x20x20xf32, #tpu.memory_space<vmem>>, vector<1x1x16x16xf32>
    %440 = vector.shape_cast %439 : vector<1x1x16x16xf32> to vector<16x16xf32>
    %c44 = arith.constant 44 : index
    %441 = memref.load %arg3[%c44] : memref<81xf32, #tpu.memory_space<smem>>
    %442 = vector.broadcast %441 : f32 to vector<16x16xf32>
    %443 = arith.mulf %442, %440 : vector<16x16xf32>
    %444 = arith.addf %435, %443 : vector<16x16xf32>
    %445 = arith.addf %361, %444 : vector<16x16xf32>
    %c5_234 = arith.constant 5 : index
    %446 = memref.load %arg4[%c5_234] : memref<10xf32, #tpu.memory_space<smem>>
    %447 = vector.broadcast %446 : f32 to vector<16x16xf32>
    %c1_i32_235 = arith.constant 1 : i32
    %448 = arith.addi %1, %c1_i32_235 : i32
    %c0_i32_236 = arith.constant 0 : i32
    %449 = arith.addi %448, %c0_i32_236 : i32
    %c0_237 = arith.constant 0 : index
    %c0_238 = arith.constant 0 : index
    %450 = arith.index_cast %449 : i32 to index
    %c2_239 = arith.constant 2 : index
    %451 = vector.load %arg2[%c0_237, %c0_238, %450, %c2_239] : memref<1x1x20x20xf32, #tpu.memory_space<vmem>>, vector<1x1x16x16xf32>
    %452 = vector.shape_cast %451 : vector<1x1x16x16xf32> to vector<16x16xf32>
    %c45 = arith.constant 45 : index
    %453 = memref.load %arg3[%c45] : memref<81xf32, #tpu.memory_space<smem>>
    %454 = vector.broadcast %453 : f32 to vector<16x16xf32>
    %455 = arith.mulf %454, %452 : vector<16x16xf32>
    %456 = arith.addf %447, %455 : vector<16x16xf32>
    %c1_i32_240 = arith.constant 1 : i32
    %457 = arith.addi %1, %c1_i32_240 : i32
    %c0_i32_241 = arith.constant 0 : i32
    %458 = arith.addi %457, %c0_i32_241 : i32
    %c0_242 = arith.constant 0 : index
    %c0_243 = arith.constant 0 : index
    %459 = arith.index_cast %458 : i32 to index
    %c3_244 = arith.constant 3 : index
    %460 = vector.load %arg2[%c0_242, %c0_243, %459, %c3_244] : memref<1x1x20x20xf32, #tpu.memory_space<vmem>>, vector<1x1x16x16xf32>
    %461 = vector.shape_cast %460 : vector<1x1x16x16xf32> to vector<16x16xf32>
    %c46 = arith.constant 46 : index
    %462 = memref.load %arg3[%c46] : memref<81xf32, #tpu.memory_space<smem>>
    %463 = vector.broadcast %462 : f32 to vector<16x16xf32>
    %464 = arith.mulf %463, %461 : vector<16x16xf32>
    %465 = arith.addf %456, %464 : vector<16x16xf32>
    %c1_i32_245 = arith.constant 1 : i32
    %466 = arith.addi %1, %c1_i32_245 : i32
    %c0_i32_246 = arith.constant 0 : i32
    %467 = arith.addi %466, %c0_i32_246 : i32
    %c0_247 = arith.constant 0 : index
    %c0_248 = arith.constant 0 : index
    %468 = arith.index_cast %467 : i32 to index
    %c4_249 = arith.constant 4 : index
    %469 = vector.load %arg2[%c0_247, %c0_248, %468, %c4_249] : memref<1x1x20x20xf32, #tpu.memory_space<vmem>>, vector<1x1x16x16xf32>
    %470 = vector.shape_cast %469 : vector<1x1x16x16xf32> to vector<16x16xf32>
    %c47 = arith.constant 47 : index
    %471 = memref.load %arg3[%c47] : memref<81xf32, #tpu.memory_space<smem>>
    %472 = vector.broadcast %471 : f32 to vector<16x16xf32>
    %473 = arith.mulf %472, %470 : vector<16x16xf32>
    %474 = arith.addf %465, %473 : vector<16x16xf32>
    %c1_i32_250 = arith.constant 1 : i32
    %475 = arith.addi %1, %c1_i32_250 : i32
    %c1_i32_251 = arith.constant 1 : i32
    %476 = arith.addi %475, %c1_i32_251 : i32
    %c0_252 = arith.constant 0 : index
    %c0_253 = arith.constant 0 : index
    %477 = arith.index_cast %476 : i32 to index
    %c2_254 = arith.constant 2 : index
    %478 = vector.load %arg2[%c0_252, %c0_253, %477, %c2_254] : memref<1x1x20x20xf32, #tpu.memory_space<vmem>>, vector<1x1x16x16xf32>
    %479 = vector.shape_cast %478 : vector<1x1x16x16xf32> to vector<16x16xf32>
    %c48 = arith.constant 48 : index
    %480 = memref.load %arg3[%c48] : memref<81xf32, #tpu.memory_space<smem>>
    %481 = vector.broadcast %480 : f32 to vector<16x16xf32>
    %482 = arith.mulf %481, %479 : vector<16x16xf32>
    %483 = arith.addf %474, %482 : vector<16x16xf32>
    %c1_i32_255 = arith.constant 1 : i32
    %484 = arith.addi %1, %c1_i32_255 : i32
    %c1_i32_256 = arith.constant 1 : i32
    %485 = arith.addi %484, %c1_i32_256 : i32
    %c0_257 = arith.constant 0 : index
    %c0_258 = arith.constant 0 : index
    %486 = arith.index_cast %485 : i32 to index
    %c3_259 = arith.constant 3 : index
    %487 = vector.load %arg2[%c0_257, %c0_258, %486, %c3_259] : memref<1x1x20x20xf32, #tpu.memory_space<vmem>>, vector<1x1x16x16xf32>
    %488 = vector.shape_cast %487 : vector<1x1x16x16xf32> to vector<16x16xf32>
    %c49 = arith.constant 49 : index
    %489 = memref.load %arg3[%c49] : memref<81xf32, #tpu.memory_space<smem>>
    %490 = vector.broadcast %489 : f32 to vector<16x16xf32>
    %491 = arith.mulf %490, %488 : vector<16x16xf32>
    %492 = arith.addf %483, %491 : vector<16x16xf32>
    %c1_i32_260 = arith.constant 1 : i32
    %493 = arith.addi %1, %c1_i32_260 : i32
    %c1_i32_261 = arith.constant 1 : i32
    %494 = arith.addi %493, %c1_i32_261 : i32
    %c0_262 = arith.constant 0 : index
    %c0_263 = arith.constant 0 : index
    %495 = arith.index_cast %494 : i32 to index
    %c4_264 = arith.constant 4 : index
    %496 = vector.load %arg2[%c0_262, %c0_263, %495, %c4_264] : memref<1x1x20x20xf32, #tpu.memory_space<vmem>>, vector<1x1x16x16xf32>
    %497 = vector.shape_cast %496 : vector<1x1x16x16xf32> to vector<16x16xf32>
    %c50 = arith.constant 50 : index
    %498 = memref.load %arg3[%c50] : memref<81xf32, #tpu.memory_space<smem>>
    %499 = vector.broadcast %498 : f32 to vector<16x16xf32>
    %500 = arith.mulf %499, %497 : vector<16x16xf32>
    %501 = arith.addf %492, %500 : vector<16x16xf32>
    %c1_i32_265 = arith.constant 1 : i32
    %502 = arith.addi %1, %c1_i32_265 : i32
    %c2_i32_266 = arith.constant 2 : i32
    %503 = arith.addi %502, %c2_i32_266 : i32
    %c0_267 = arith.constant 0 : index
    %c0_268 = arith.constant 0 : index
    %504 = arith.index_cast %503 : i32 to index
    %c2_269 = arith.constant 2 : index
    %505 = vector.load %arg2[%c0_267, %c0_268, %504, %c2_269] : memref<1x1x20x20xf32, #tpu.memory_space<vmem>>, vector<1x1x16x16xf32>
    %506 = vector.shape_cast %505 : vector<1x1x16x16xf32> to vector<16x16xf32>
    %c51 = arith.constant 51 : index
    %507 = memref.load %arg3[%c51] : memref<81xf32, #tpu.memory_space<smem>>
    %508 = vector.broadcast %507 : f32 to vector<16x16xf32>
    %509 = arith.mulf %508, %506 : vector<16x16xf32>
    %510 = arith.addf %501, %509 : vector<16x16xf32>
    %c1_i32_270 = arith.constant 1 : i32
    %511 = arith.addi %1, %c1_i32_270 : i32
    %c2_i32_271 = arith.constant 2 : i32
    %512 = arith.addi %511, %c2_i32_271 : i32
    %c0_272 = arith.constant 0 : index
    %c0_273 = arith.constant 0 : index
    %513 = arith.index_cast %512 : i32 to index
    %c3_274 = arith.constant 3 : index
    %514 = vector.load %arg2[%c0_272, %c0_273, %513, %c3_274] : memref<1x1x20x20xf32, #tpu.memory_space<vmem>>, vector<1x1x16x16xf32>
    %515 = vector.shape_cast %514 : vector<1x1x16x16xf32> to vector<16x16xf32>
    %c52 = arith.constant 52 : index
    %516 = memref.load %arg3[%c52] : memref<81xf32, #tpu.memory_space<smem>>
    %517 = vector.broadcast %516 : f32 to vector<16x16xf32>
    %518 = arith.mulf %517, %515 : vector<16x16xf32>
    %519 = arith.addf %510, %518 : vector<16x16xf32>
    %c1_i32_275 = arith.constant 1 : i32
    %520 = arith.addi %1, %c1_i32_275 : i32
    %c2_i32_276 = arith.constant 2 : i32
    %521 = arith.addi %520, %c2_i32_276 : i32
    %c0_277 = arith.constant 0 : index
    %c0_278 = arith.constant 0 : index
    %522 = arith.index_cast %521 : i32 to index
    %c4_279 = arith.constant 4 : index
    %523 = vector.load %arg2[%c0_277, %c0_278, %522, %c4_279] : memref<1x1x20x20xf32, #tpu.memory_space<vmem>>, vector<1x1x16x16xf32>
    %524 = vector.shape_cast %523 : vector<1x1x16x16xf32> to vector<16x16xf32>
    %c53 = arith.constant 53 : index
    %525 = memref.load %arg3[%c53] : memref<81xf32, #tpu.memory_space<smem>>
    %526 = vector.broadcast %525 : f32 to vector<16x16xf32>
    %527 = arith.mulf %526, %524 : vector<16x16xf32>
    %528 = arith.addf %519, %527 : vector<16x16xf32>
    %cst_280 = arith.constant 0.000000e+00 : f32
    %529 = vector.broadcast %cst_280 : f32 to vector<16x16xf32>
    %530 = arith.select %13, %528, %529 : vector<16x16xi1>, vector<16x16xf32>
    %531 = arith.addf %445, %530 : vector<16x16xf32>
    %c6_281 = arith.constant 6 : index
    %532 = memref.load %arg4[%c6_281] : memref<10xf32, #tpu.memory_space<smem>>
    %533 = vector.broadcast %532 : f32 to vector<16x16xf32>
    %c2_i32_282 = arith.constant 2 : i32
    %534 = arith.addi %1, %c2_i32_282 : i32
    %c0_i32_283 = arith.constant 0 : i32
    %535 = arith.addi %534, %c0_i32_283 : i32
    %c0_284 = arith.constant 0 : index
    %c0_285 = arith.constant 0 : index
    %536 = arith.index_cast %535 : i32 to index
    %c0_286 = arith.constant 0 : index
    %537 = vector.load %arg2[%c0_284, %c0_285, %536, %c0_286] : memref<1x1x20x20xf32, #tpu.memory_space<vmem>>, vector<1x1x16x16xf32>
    %538 = vector.shape_cast %537 : vector<1x1x16x16xf32> to vector<16x16xf32>
    %c54 = arith.constant 54 : index
    %539 = memref.load %arg3[%c54] : memref<81xf32, #tpu.memory_space<smem>>
    %540 = vector.broadcast %539 : f32 to vector<16x16xf32>
    %541 = arith.mulf %540, %538 : vector<16x16xf32>
    %542 = arith.addf %533, %541 : vector<16x16xf32>
    %c2_i32_287 = arith.constant 2 : i32
    %543 = arith.addi %1, %c2_i32_287 : i32
    %c0_i32_288 = arith.constant 0 : i32
    %544 = arith.addi %543, %c0_i32_288 : i32
    %c0_289 = arith.constant 0 : index
    %c0_290 = arith.constant 0 : index
    %545 = arith.index_cast %544 : i32 to index
    %c1_291 = arith.constant 1 : index
    %546 = vector.load %arg2[%c0_289, %c0_290, %545, %c1_291] : memref<1x1x20x20xf32, #tpu.memory_space<vmem>>, vector<1x1x16x16xf32>
    %547 = vector.shape_cast %546 : vector<1x1x16x16xf32> to vector<16x16xf32>
    %c55 = arith.constant 55 : index
    %548 = memref.load %arg3[%c55] : memref<81xf32, #tpu.memory_space<smem>>
    %549 = vector.broadcast %548 : f32 to vector<16x16xf32>
    %550 = arith.mulf %549, %547 : vector<16x16xf32>
    %551 = arith.addf %542, %550 : vector<16x16xf32>
    %c2_i32_292 = arith.constant 2 : i32
    %552 = arith.addi %1, %c2_i32_292 : i32
    %c0_i32_293 = arith.constant 0 : i32
    %553 = arith.addi %552, %c0_i32_293 : i32
    %c0_294 = arith.constant 0 : index
    %c0_295 = arith.constant 0 : index
    %554 = arith.index_cast %553 : i32 to index
    %c2_296 = arith.constant 2 : index
    %555 = vector.load %arg2[%c0_294, %c0_295, %554, %c2_296] : memref<1x1x20x20xf32, #tpu.memory_space<vmem>>, vector<1x1x16x16xf32>
    %556 = vector.shape_cast %555 : vector<1x1x16x16xf32> to vector<16x16xf32>
    %c56 = arith.constant 56 : index
    %557 = memref.load %arg3[%c56] : memref<81xf32, #tpu.memory_space<smem>>
    %558 = vector.broadcast %557 : f32 to vector<16x16xf32>
    %559 = arith.mulf %558, %556 : vector<16x16xf32>
    %560 = arith.addf %551, %559 : vector<16x16xf32>
    %c2_i32_297 = arith.constant 2 : i32
    %561 = arith.addi %1, %c2_i32_297 : i32
    %c1_i32_298 = arith.constant 1 : i32
    %562 = arith.addi %561, %c1_i32_298 : i32
    %c0_299 = arith.constant 0 : index
    %c0_300 = arith.constant 0 : index
    %563 = arith.index_cast %562 : i32 to index
    %c0_301 = arith.constant 0 : index
    %564 = vector.load %arg2[%c0_299, %c0_300, %563, %c0_301] : memref<1x1x20x20xf32, #tpu.memory_space<vmem>>, vector<1x1x16x16xf32>
    %565 = vector.shape_cast %564 : vector<1x1x16x16xf32> to vector<16x16xf32>
    %c57 = arith.constant 57 : index
    %566 = memref.load %arg3[%c57] : memref<81xf32, #tpu.memory_space<smem>>
    %567 = vector.broadcast %566 : f32 to vector<16x16xf32>
    %568 = arith.mulf %567, %565 : vector<16x16xf32>
    %569 = arith.addf %560, %568 : vector<16x16xf32>
    %c2_i32_302 = arith.constant 2 : i32
    %570 = arith.addi %1, %c2_i32_302 : i32
    %c1_i32_303 = arith.constant 1 : i32
    %571 = arith.addi %570, %c1_i32_303 : i32
    %c0_304 = arith.constant 0 : index
    %c0_305 = arith.constant 0 : index
    %572 = arith.index_cast %571 : i32 to index
    %c1_306 = arith.constant 1 : index
    %573 = vector.load %arg2[%c0_304, %c0_305, %572, %c1_306] : memref<1x1x20x20xf32, #tpu.memory_space<vmem>>, vector<1x1x16x16xf32>
    %574 = vector.shape_cast %573 : vector<1x1x16x16xf32> to vector<16x16xf32>
    %c58 = arith.constant 58 : index
    %575 = memref.load %arg3[%c58] : memref<81xf32, #tpu.memory_space<smem>>
    %576 = vector.broadcast %575 : f32 to vector<16x16xf32>
    %577 = arith.mulf %576, %574 : vector<16x16xf32>
    %578 = arith.addf %569, %577 : vector<16x16xf32>
    %c2_i32_307 = arith.constant 2 : i32
    %579 = arith.addi %1, %c2_i32_307 : i32
    %c1_i32_308 = arith.constant 1 : i32
    %580 = arith.addi %579, %c1_i32_308 : i32
    %c0_309 = arith.constant 0 : index
    %c0_310 = arith.constant 0 : index
    %581 = arith.index_cast %580 : i32 to index
    %c2_311 = arith.constant 2 : index
    %582 = vector.load %arg2[%c0_309, %c0_310, %581, %c2_311] : memref<1x1x20x20xf32, #tpu.memory_space<vmem>>, vector<1x1x16x16xf32>
    %583 = vector.shape_cast %582 : vector<1x1x16x16xf32> to vector<16x16xf32>
    %c59 = arith.constant 59 : index
    %584 = memref.load %arg3[%c59] : memref<81xf32, #tpu.memory_space<smem>>
    %585 = vector.broadcast %584 : f32 to vector<16x16xf32>
    %586 = arith.mulf %585, %583 : vector<16x16xf32>
    %587 = arith.addf %578, %586 : vector<16x16xf32>
    %c2_i32_312 = arith.constant 2 : i32
    %588 = arith.addi %1, %c2_i32_312 : i32
    %c2_i32_313 = arith.constant 2 : i32
    %589 = arith.addi %588, %c2_i32_313 : i32
    %c0_314 = arith.constant 0 : index
    %c0_315 = arith.constant 0 : index
    %590 = arith.index_cast %589 : i32 to index
    %c0_316 = arith.constant 0 : index
    %591 = vector.load %arg2[%c0_314, %c0_315, %590, %c0_316] : memref<1x1x20x20xf32, #tpu.memory_space<vmem>>, vector<1x1x16x16xf32>
    %592 = vector.shape_cast %591 : vector<1x1x16x16xf32> to vector<16x16xf32>
    %c60 = arith.constant 60 : index
    %593 = memref.load %arg3[%c60] : memref<81xf32, #tpu.memory_space<smem>>
    %594 = vector.broadcast %593 : f32 to vector<16x16xf32>
    %595 = arith.mulf %594, %592 : vector<16x16xf32>
    %596 = arith.addf %587, %595 : vector<16x16xf32>
    %c2_i32_317 = arith.constant 2 : i32
    %597 = arith.addi %1, %c2_i32_317 : i32
    %c2_i32_318 = arith.constant 2 : i32
    %598 = arith.addi %597, %c2_i32_318 : i32
    %c0_319 = arith.constant 0 : index
    %c0_320 = arith.constant 0 : index
    %599 = arith.index_cast %598 : i32 to index
    %c1_321 = arith.constant 1 : index
    %600 = vector.load %arg2[%c0_319, %c0_320, %599, %c1_321] : memref<1x1x20x20xf32, #tpu.memory_space<vmem>>, vector<1x1x16x16xf32>
    %601 = vector.shape_cast %600 : vector<1x1x16x16xf32> to vector<16x16xf32>
    %c61 = arith.constant 61 : index
    %602 = memref.load %arg3[%c61] : memref<81xf32, #tpu.memory_space<smem>>
    %603 = vector.broadcast %602 : f32 to vector<16x16xf32>
    %604 = arith.mulf %603, %601 : vector<16x16xf32>
    %605 = arith.addf %596, %604 : vector<16x16xf32>
    %c2_i32_322 = arith.constant 2 : i32
    %606 = arith.addi %1, %c2_i32_322 : i32
    %c2_i32_323 = arith.constant 2 : i32
    %607 = arith.addi %606, %c2_i32_323 : i32
    %c0_324 = arith.constant 0 : index
    %c0_325 = arith.constant 0 : index
    %608 = arith.index_cast %607 : i32 to index
    %c2_326 = arith.constant 2 : index
    %609 = vector.load %arg2[%c0_324, %c0_325, %608, %c2_326] : memref<1x1x20x20xf32, #tpu.memory_space<vmem>>, vector<1x1x16x16xf32>
    %610 = vector.shape_cast %609 : vector<1x1x16x16xf32> to vector<16x16xf32>
    %c62 = arith.constant 62 : index
    %611 = memref.load %arg3[%c62] : memref<81xf32, #tpu.memory_space<smem>>
    %612 = vector.broadcast %611 : f32 to vector<16x16xf32>
    %613 = arith.mulf %612, %610 : vector<16x16xf32>
    %614 = arith.addf %605, %613 : vector<16x16xf32>
    %615 = arith.andi %9, %11 : vector<16x16xi1>
    %cst_327 = arith.constant 0.000000e+00 : f32
    %616 = vector.broadcast %cst_327 : f32 to vector<16x16xf32>
    %617 = arith.select %615, %614, %616 : vector<16x16xi1>, vector<16x16xf32>
    %618 = arith.addf %531, %617 : vector<16x16xf32>
    %c7_328 = arith.constant 7 : index
    %619 = memref.load %arg4[%c7_328] : memref<10xf32, #tpu.memory_space<smem>>
    %620 = vector.broadcast %619 : f32 to vector<16x16xf32>
    %c2_i32_329 = arith.constant 2 : i32
    %621 = arith.addi %1, %c2_i32_329 : i32
    %c0_i32_330 = arith.constant 0 : i32
    %622 = arith.addi %621, %c0_i32_330 : i32
    %c0_331 = arith.constant 0 : index
    %c0_332 = arith.constant 0 : index
    %623 = arith.index_cast %622 : i32 to index
    %c1_333 = arith.constant 1 : index
    %624 = vector.load %arg2[%c0_331, %c0_332, %623, %c1_333] : memref<1x1x20x20xf32, #tpu.memory_space<vmem>>, vector<1x1x16x16xf32>
    %625 = vector.shape_cast %624 : vector<1x1x16x16xf32> to vector<16x16xf32>
    %c63 = arith.constant 63 : index
    %626 = memref.load %arg3[%c63] : memref<81xf32, #tpu.memory_space<smem>>
    %627 = vector.broadcast %626 : f32 to vector<16x16xf32>
    %628 = arith.mulf %627, %625 : vector<16x16xf32>
    %629 = arith.addf %620, %628 : vector<16x16xf32>
    %c2_i32_334 = arith.constant 2 : i32
    %630 = arith.addi %1, %c2_i32_334 : i32
    %c0_i32_335 = arith.constant 0 : i32
    %631 = arith.addi %630, %c0_i32_335 : i32
    %c0_336 = arith.constant 0 : index
    %c0_337 = arith.constant 0 : index
    %632 = arith.index_cast %631 : i32 to index
    %c2_338 = arith.constant 2 : index
    %633 = vector.load %arg2[%c0_336, %c0_337, %632, %c2_338] : memref<1x1x20x20xf32, #tpu.memory_space<vmem>>, vector<1x1x16x16xf32>
    %634 = vector.shape_cast %633 : vector<1x1x16x16xf32> to vector<16x16xf32>
    %c64 = arith.constant 64 : index
    %635 = memref.load %arg3[%c64] : memref<81xf32, #tpu.memory_space<smem>>
    %636 = vector.broadcast %635 : f32 to vector<16x16xf32>
    %637 = arith.mulf %636, %634 : vector<16x16xf32>
    %638 = arith.addf %629, %637 : vector<16x16xf32>
    %c2_i32_339 = arith.constant 2 : i32
    %639 = arith.addi %1, %c2_i32_339 : i32
    %c0_i32_340 = arith.constant 0 : i32
    %640 = arith.addi %639, %c0_i32_340 : i32
    %c0_341 = arith.constant 0 : index
    %c0_342 = arith.constant 0 : index
    %641 = arith.index_cast %640 : i32 to index
    %c3_343 = arith.constant 3 : index
    %642 = vector.load %arg2[%c0_341, %c0_342, %641, %c3_343] : memref<1x1x20x20xf32, #tpu.memory_space<vmem>>, vector<1x1x16x16xf32>
    %643 = vector.shape_cast %642 : vector<1x1x16x16xf32> to vector<16x16xf32>
    %c65 = arith.constant 65 : index
    %644 = memref.load %arg3[%c65] : memref<81xf32, #tpu.memory_space<smem>>
    %645 = vector.broadcast %644 : f32 to vector<16x16xf32>
    %646 = arith.mulf %645, %643 : vector<16x16xf32>
    %647 = arith.addf %638, %646 : vector<16x16xf32>
    %c2_i32_344 = arith.constant 2 : i32
    %648 = arith.addi %1, %c2_i32_344 : i32
    %c1_i32_345 = arith.constant 1 : i32
    %649 = arith.addi %648, %c1_i32_345 : i32
    %c0_346 = arith.constant 0 : index
    %c0_347 = arith.constant 0 : index
    %650 = arith.index_cast %649 : i32 to index
    %c1_348 = arith.constant 1 : index
    %651 = vector.load %arg2[%c0_346, %c0_347, %650, %c1_348] : memref<1x1x20x20xf32, #tpu.memory_space<vmem>>, vector<1x1x16x16xf32>
    %652 = vector.shape_cast %651 : vector<1x1x16x16xf32> to vector<16x16xf32>
    %c66 = arith.constant 66 : index
    %653 = memref.load %arg3[%c66] : memref<81xf32, #tpu.memory_space<smem>>
    %654 = vector.broadcast %653 : f32 to vector<16x16xf32>
    %655 = arith.mulf %654, %652 : vector<16x16xf32>
    %656 = arith.addf %647, %655 : vector<16x16xf32>
    %c2_i32_349 = arith.constant 2 : i32
    %657 = arith.addi %1, %c2_i32_349 : i32
    %c1_i32_350 = arith.constant 1 : i32
    %658 = arith.addi %657, %c1_i32_350 : i32
    %c0_351 = arith.constant 0 : index
    %c0_352 = arith.constant 0 : index
    %659 = arith.index_cast %658 : i32 to index
    %c2_353 = arith.constant 2 : index
    %660 = vector.load %arg2[%c0_351, %c0_352, %659, %c2_353] : memref<1x1x20x20xf32, #tpu.memory_space<vmem>>, vector<1x1x16x16xf32>
    %661 = vector.shape_cast %660 : vector<1x1x16x16xf32> to vector<16x16xf32>
    %c67 = arith.constant 67 : index
    %662 = memref.load %arg3[%c67] : memref<81xf32, #tpu.memory_space<smem>>
    %663 = vector.broadcast %662 : f32 to vector<16x16xf32>
    %664 = arith.mulf %663, %661 : vector<16x16xf32>
    %665 = arith.addf %656, %664 : vector<16x16xf32>
    %c2_i32_354 = arith.constant 2 : i32
    %666 = arith.addi %1, %c2_i32_354 : i32
    %c1_i32_355 = arith.constant 1 : i32
    %667 = arith.addi %666, %c1_i32_355 : i32
    %c0_356 = arith.constant 0 : index
    %c0_357 = arith.constant 0 : index
    %668 = arith.index_cast %667 : i32 to index
    %c3_358 = arith.constant 3 : index
    %669 = vector.load %arg2[%c0_356, %c0_357, %668, %c3_358] : memref<1x1x20x20xf32, #tpu.memory_space<vmem>>, vector<1x1x16x16xf32>
    %670 = vector.shape_cast %669 : vector<1x1x16x16xf32> to vector<16x16xf32>
    %c68 = arith.constant 68 : index
    %671 = memref.load %arg3[%c68] : memref<81xf32, #tpu.memory_space<smem>>
    %672 = vector.broadcast %671 : f32 to vector<16x16xf32>
    %673 = arith.mulf %672, %670 : vector<16x16xf32>
    %674 = arith.addf %665, %673 : vector<16x16xf32>
    %c2_i32_359 = arith.constant 2 : i32
    %675 = arith.addi %1, %c2_i32_359 : i32
    %c2_i32_360 = arith.constant 2 : i32
    %676 = arith.addi %675, %c2_i32_360 : i32
    %c0_361 = arith.constant 0 : index
    %c0_362 = arith.constant 0 : index
    %677 = arith.index_cast %676 : i32 to index
    %c1_363 = arith.constant 1 : index
    %678 = vector.load %arg2[%c0_361, %c0_362, %677, %c1_363] : memref<1x1x20x20xf32, #tpu.memory_space<vmem>>, vector<1x1x16x16xf32>
    %679 = vector.shape_cast %678 : vector<1x1x16x16xf32> to vector<16x16xf32>
    %c69 = arith.constant 69 : index
    %680 = memref.load %arg3[%c69] : memref<81xf32, #tpu.memory_space<smem>>
    %681 = vector.broadcast %680 : f32 to vector<16x16xf32>
    %682 = arith.mulf %681, %679 : vector<16x16xf32>
    %683 = arith.addf %674, %682 : vector<16x16xf32>
    %c2_i32_364 = arith.constant 2 : i32
    %684 = arith.addi %1, %c2_i32_364 : i32
    %c2_i32_365 = arith.constant 2 : i32
    %685 = arith.addi %684, %c2_i32_365 : i32
    %c0_366 = arith.constant 0 : index
    %c0_367 = arith.constant 0 : index
    %686 = arith.index_cast %685 : i32 to index
    %c2_368 = arith.constant 2 : index
    %687 = vector.load %arg2[%c0_366, %c0_367, %686, %c2_368] : memref<1x1x20x20xf32, #tpu.memory_space<vmem>>, vector<1x1x16x16xf32>
    %688 = vector.shape_cast %687 : vector<1x1x16x16xf32> to vector<16x16xf32>
    %c70 = arith.constant 70 : index
    %689 = memref.load %arg3[%c70] : memref<81xf32, #tpu.memory_space<smem>>
    %690 = vector.broadcast %689 : f32 to vector<16x16xf32>
    %691 = arith.mulf %690, %688 : vector<16x16xf32>
    %692 = arith.addf %683, %691 : vector<16x16xf32>
    %c2_i32_369 = arith.constant 2 : i32
    %693 = arith.addi %1, %c2_i32_369 : i32
    %c2_i32_370 = arith.constant 2 : i32
    %694 = arith.addi %693, %c2_i32_370 : i32
    %c0_371 = arith.constant 0 : index
    %c0_372 = arith.constant 0 : index
    %695 = arith.index_cast %694 : i32 to index
    %c3_373 = arith.constant 3 : index
    %696 = vector.load %arg2[%c0_371, %c0_372, %695, %c3_373] : memref<1x1x20x20xf32, #tpu.memory_space<vmem>>, vector<1x1x16x16xf32>
    %697 = vector.shape_cast %696 : vector<1x1x16x16xf32> to vector<16x16xf32>
    %c71 = arith.constant 71 : index
    %698 = memref.load %arg3[%c71] : memref<81xf32, #tpu.memory_space<smem>>
    %699 = vector.broadcast %698 : f32 to vector<16x16xf32>
    %700 = arith.mulf %699, %697 : vector<16x16xf32>
    %701 = arith.addf %692, %700 : vector<16x16xf32>
    %cst_374 = arith.constant 0.000000e+00 : f32
    %702 = vector.broadcast %cst_374 : f32 to vector<16x16xf32>
    %703 = arith.select %9, %701, %702 : vector<16x16xi1>, vector<16x16xf32>
    %704 = arith.addf %618, %703 : vector<16x16xf32>
    %c8_375 = arith.constant 8 : index
    %705 = memref.load %arg4[%c8_375] : memref<10xf32, #tpu.memory_space<smem>>
    %706 = vector.broadcast %705 : f32 to vector<16x16xf32>
    %c2_i32_376 = arith.constant 2 : i32
    %707 = arith.addi %1, %c2_i32_376 : i32
    %c0_i32_377 = arith.constant 0 : i32
    %708 = arith.addi %707, %c0_i32_377 : i32
    %c0_378 = arith.constant 0 : index
    %c0_379 = arith.constant 0 : index
    %709 = arith.index_cast %708 : i32 to index
    %c2_380 = arith.constant 2 : index
    %710 = vector.load %arg2[%c0_378, %c0_379, %709, %c2_380] : memref<1x1x20x20xf32, #tpu.memory_space<vmem>>, vector<1x1x16x16xf32>
    %711 = vector.shape_cast %710 : vector<1x1x16x16xf32> to vector<16x16xf32>
    %c72 = arith.constant 72 : index
    %712 = memref.load %arg3[%c72] : memref<81xf32, #tpu.memory_space<smem>>
    %713 = vector.broadcast %712 : f32 to vector<16x16xf32>
    %714 = arith.mulf %713, %711 : vector<16x16xf32>
    %715 = arith.addf %706, %714 : vector<16x16xf32>
    %c2_i32_381 = arith.constant 2 : i32
    %716 = arith.addi %1, %c2_i32_381 : i32
    %c0_i32_382 = arith.constant 0 : i32
    %717 = arith.addi %716, %c0_i32_382 : i32
    %c0_383 = arith.constant 0 : index
    %c0_384 = arith.constant 0 : index
    %718 = arith.index_cast %717 : i32 to index
    %c3_385 = arith.constant 3 : index
    %719 = vector.load %arg2[%c0_383, %c0_384, %718, %c3_385] : memref<1x1x20x20xf32, #tpu.memory_space<vmem>>, vector<1x1x16x16xf32>
    %720 = vector.shape_cast %719 : vector<1x1x16x16xf32> to vector<16x16xf32>
    %c73 = arith.constant 73 : index
    %721 = memref.load %arg3[%c73] : memref<81xf32, #tpu.memory_space<smem>>
    %722 = vector.broadcast %721 : f32 to vector<16x16xf32>
    %723 = arith.mulf %722, %720 : vector<16x16xf32>
    %724 = arith.addf %715, %723 : vector<16x16xf32>
    %c2_i32_386 = arith.constant 2 : i32
    %725 = arith.addi %1, %c2_i32_386 : i32
    %c0_i32_387 = arith.constant 0 : i32
    %726 = arith.addi %725, %c0_i32_387 : i32
    %c0_388 = arith.constant 0 : index
    %c0_389 = arith.constant 0 : index
    %727 = arith.index_cast %726 : i32 to index
    %c4_390 = arith.constant 4 : index
    %728 = vector.load %arg2[%c0_388, %c0_389, %727, %c4_390] : memref<1x1x20x20xf32, #tpu.memory_space<vmem>>, vector<1x1x16x16xf32>
    %729 = vector.shape_cast %728 : vector<1x1x16x16xf32> to vector<16x16xf32>
    %c74 = arith.constant 74 : index
    %730 = memref.load %arg3[%c74] : memref<81xf32, #tpu.memory_space<smem>>
    %731 = vector.broadcast %730 : f32 to vector<16x16xf32>
    %732 = arith.mulf %731, %729 : vector<16x16xf32>
    %733 = arith.addf %724, %732 : vector<16x16xf32>
    %c2_i32_391 = arith.constant 2 : i32
    %734 = arith.addi %1, %c2_i32_391 : i32
    %c1_i32_392 = arith.constant 1 : i32
    %735 = arith.addi %734, %c1_i32_392 : i32
    %c0_393 = arith.constant 0 : index
    %c0_394 = arith.constant 0 : index
    %736 = arith.index_cast %735 : i32 to index
    %c2_395 = arith.constant 2 : index
    %737 = vector.load %arg2[%c0_393, %c0_394, %736, %c2_395] : memref<1x1x20x20xf32, #tpu.memory_space<vmem>>, vector<1x1x16x16xf32>
    %738 = vector.shape_cast %737 : vector<1x1x16x16xf32> to vector<16x16xf32>
    %c75 = arith.constant 75 : index
    %739 = memref.load %arg3[%c75] : memref<81xf32, #tpu.memory_space<smem>>
    %740 = vector.broadcast %739 : f32 to vector<16x16xf32>
    %741 = arith.mulf %740, %738 : vector<16x16xf32>
    %742 = arith.addf %733, %741 : vector<16x16xf32>
    %c2_i32_396 = arith.constant 2 : i32
    %743 = arith.addi %1, %c2_i32_396 : i32
    %c1_i32_397 = arith.constant 1 : i32
    %744 = arith.addi %743, %c1_i32_397 : i32
    %c0_398 = arith.constant 0 : index
    %c0_399 = arith.constant 0 : index
    %745 = arith.index_cast %744 : i32 to index
    %c3_400 = arith.constant 3 : index
    %746 = vector.load %arg2[%c0_398, %c0_399, %745, %c3_400] : memref<1x1x20x20xf32, #tpu.memory_space<vmem>>, vector<1x1x16x16xf32>
    %747 = vector.shape_cast %746 : vector<1x1x16x16xf32> to vector<16x16xf32>
    %c76 = arith.constant 76 : index
    %748 = memref.load %arg3[%c76] : memref<81xf32, #tpu.memory_space<smem>>
    %749 = vector.broadcast %748 : f32 to vector<16x16xf32>
    %750 = arith.mulf %749, %747 : vector<16x16xf32>
    %751 = arith.addf %742, %750 : vector<16x16xf32>
    %c2_i32_401 = arith.constant 2 : i32
    %752 = arith.addi %1, %c2_i32_401 : i32
    %c1_i32_402 = arith.constant 1 : i32
    %753 = arith.addi %752, %c1_i32_402 : i32
    %c0_403 = arith.constant 0 : index
    %c0_404 = arith.constant 0 : index
    %754 = arith.index_cast %753 : i32 to index
    %c4_405 = arith.constant 4 : index
    %755 = vector.load %arg2[%c0_403, %c0_404, %754, %c4_405] : memref<1x1x20x20xf32, #tpu.memory_space<vmem>>, vector<1x1x16x16xf32>
    %756 = vector.shape_cast %755 : vector<1x1x16x16xf32> to vector<16x16xf32>
    %c77 = arith.constant 77 : index
    %757 = memref.load %arg3[%c77] : memref<81xf32, #tpu.memory_space<smem>>
    %758 = vector.broadcast %757 : f32 to vector<16x16xf32>
    %759 = arith.mulf %758, %756 : vector<16x16xf32>
    %760 = arith.addf %751, %759 : vector<16x16xf32>
    %c2_i32_406 = arith.constant 2 : i32
    %761 = arith.addi %1, %c2_i32_406 : i32
    %c2_i32_407 = arith.constant 2 : i32
    %762 = arith.addi %761, %c2_i32_407 : i32
    %c0_408 = arith.constant 0 : index
    %c0_409 = arith.constant 0 : index
    %763 = arith.index_cast %762 : i32 to index
    %c2_410 = arith.constant 2 : index
    %764 = vector.load %arg2[%c0_408, %c0_409, %763, %c2_410] : memref<1x1x20x20xf32, #tpu.memory_space<vmem>>, vector<1x1x16x16xf32>
    %765 = vector.shape_cast %764 : vector<1x1x16x16xf32> to vector<16x16xf32>
    %c78 = arith.constant 78 : index
    %766 = memref.load %arg3[%c78] : memref<81xf32, #tpu.memory_space<smem>>
    %767 = vector.broadcast %766 : f32 to vector<16x16xf32>
    %768 = arith.mulf %767, %765 : vector<16x16xf32>
    %769 = arith.addf %760, %768 : vector<16x16xf32>
    %c2_i32_411 = arith.constant 2 : i32
    %770 = arith.addi %1, %c2_i32_411 : i32
    %c2_i32_412 = arith.constant 2 : i32
    %771 = arith.addi %770, %c2_i32_412 : i32
    %c0_413 = arith.constant 0 : index
    %c0_414 = arith.constant 0 : index
    %772 = arith.index_cast %771 : i32 to index
    %c3_415 = arith.constant 3 : index
    %773 = vector.load %arg2[%c0_413, %c0_414, %772, %c3_415] : memref<1x1x20x20xf32, #tpu.memory_space<vmem>>, vector<1x1x16x16xf32>
    %774 = vector.shape_cast %773 : vector<1x1x16x16xf32> to vector<16x16xf32>
    %c79 = arith.constant 79 : index
    %775 = memref.load %arg3[%c79] : memref<81xf32, #tpu.memory_space<smem>>
    %776 = vector.broadcast %775 : f32 to vector<16x16xf32>
    %777 = arith.mulf %776, %774 : vector<16x16xf32>
    %778 = arith.addf %769, %777 : vector<16x16xf32>
    %c2_i32_416 = arith.constant 2 : i32
    %779 = arith.addi %1, %c2_i32_416 : i32
    %c2_i32_417 = arith.constant 2 : i32
    %780 = arith.addi %779, %c2_i32_417 : i32
    %c0_418 = arith.constant 0 : index
    %c0_419 = arith.constant 0 : index
    %781 = arith.index_cast %780 : i32 to index
    %c4_420 = arith.constant 4 : index
    %782 = vector.load %arg2[%c0_418, %c0_419, %781, %c4_420] : memref<1x1x20x20xf32, #tpu.memory_space<vmem>>, vector<1x1x16x16xf32>
    %783 = vector.shape_cast %782 : vector<1x1x16x16xf32> to vector<16x16xf32>
    %c80 = arith.constant 80 : index
    %784 = memref.load %arg3[%c80] : memref<81xf32, #tpu.memory_space<smem>>
    %785 = vector.broadcast %784 : f32 to vector<16x16xf32>
    %786 = arith.mulf %785, %783 : vector<16x16xf32>
    %787 = arith.addf %778, %786 : vector<16x16xf32>
    %788 = arith.andi %9, %13 : vector<16x16xi1>
    %cst_421 = arith.constant 0.000000e+00 : f32
    %789 = vector.broadcast %cst_421 : f32 to vector<16x16xf32>
    %790 = arith.select %788, %787, %789 : vector<16x16xi1>, vector<16x16xf32>
    %791 = arith.addf %704, %790 : vector<16x16xf32>
    %792 = arith.negf %791 : vector<16x16xf32>
    %793 = math.exp %792 : vector<16x16xf32>
    %cst_422 = arith.constant 1.000000e+00 : f32
    %794 = vector.broadcast %cst_422 : f32 to vector<16x16xf32>
    %795 = arith.addf %794, %793 : vector<16x16xf32>
    %796 = arith.divf %794, %795 : vector<16x16xf32>
    %c0_423 = arith.constant 0 : index
    %c0_424 = arith.constant 0 : index
    %c0_425 = arith.constant 0 : index
    %797 = vector.load %arg5[%c0_423, %c0_424, %c0_425] : memref<1x16x16xf32, #tpu.memory_space<vmem>>, vector<1x16x16xf32>
    %798 = vector.shape_cast %797 : vector<1x16x16xf32> to vector<16x16xf32>
    %799 = vector.shape_cast %796 : vector<16x16xf32> to vector<1x16x16xf32>
    tpu.vector_store %arg5[%c0_423, %c0_424, %c0_425], %799 {strides = array<i32>} : memref<1x16x16xf32, #tpu.memory_space<vmem>>, vector<1x16x16xf32>,
    return
  }
  func.func @transform_0(%arg0: i32, %arg1: i32) -> (i32, i32, i32, i32) {
    %c0_i32 = arith.constant 0 : i32
    %c0_i32_0 = arith.constant 0 : i32
    %c0_i32_1 = arith.constant 0 : i32
    %c0_i32_2 = arith.constant 0 : i32
    return %arg0, %c0_i32, %c0_i32_0, %c0_i32_1 : i32, i32, i32, i32
  }
  func.func @transform_1(%arg0: i32, %arg1: i32) -> i32 {
    %c0_i32 = arith.constant 0 : i32
    %c0_i32_0 = arith.constant 0 : i32
    return %c0_i32 : i32
  }
  func.func @transform_2(%arg0: i32, %arg1: i32) -> i32 {
    %c0_i32 = arith.constant 0 : i32
    %c0_i32_0 = arith.constant 0 : i32
    return %c0_i32 : i32
  }
  func.func @transform_3(%arg0: i32, %arg1: i32) -> (i32, i32, i32) {
    %c0_i32 = arith.constant 0 : i32
    %c0_i32_0 = arith.constant 0 : i32
    return %arg0, %arg1, %c0_i32 : i32, i32, i32
  }
}

</mosaic_0001>

<llo_original>
// kernel: mul.15
$region0: #{mul.15}
  %s0 = inlined_call_operand.vmem [shape: f32[16,3,3], index: 0, kind: input, shape index: {}]
  %s1 = inlined_call_operand.vmem [shape: f32[16,9], index: 1, kind: output, shape index: {}]
  $region1: #{mul.15} parent=0
    #allocation0 [shape = 'u8[12288]{0}', space=vmem, size = 0x3000, scoped, tag = 'scoped mem for input reshape']
    %s3 = ssub.s32 16, 1
    %s4 = scalar_lea.vmem %s0, 8
    %v5 = vld [vmem:[%s4] sm:%s3]
    %s6 = scalar_lea.vmem [#allocation0], 16
    %7 = vst [vmem:[%s6] sm:%s3] %v5
    %s8 = scalar_lea.vmem %s0, 4
    %v9 = vld [vmem:[%s8] sm:%s3]
    %s10 = scalar_lea.vmem [#allocation0], 8
    %11 = vst [vmem:[%s10] sm:%s3] %v9
    %v12 = vld [vmem:[%s0] sm:%s3]
    %13 = vst [vmem:[#allocation0] sm:%s3] %v12
    %v14 = vld [vmem:[#allocation0] sm:$0x7]
    %vm15 = vcmask 130048
    %16 = vst.msk [vmem:[%s1] sm:$0x7] %vm15, %v14
    %s17 = scalar_lea.vmem [#allocation0], 8
    %v18 = vld [vmem:[%s17] sm:$0x7]
    %vm19 = vcmask 130048
    %s20 = scalar_lea.vmem %s1, 3
    %21 = vst.msk [vmem:[%s20] sm:$0x7] %vm19, %v18
    %s22 = scalar_lea.vmem [#allocation0], 16
    %v23 = vld [vmem:[%s22] sm:$0x7]
    %vm24 = vcmask 130048
    %s25 = scalar_lea.vmem %s1, 6
    %26 = vst.msk [vmem:[%s25] sm:$0x7] %vm24, %v23

// kernel: land_use_mask_forward.3
$region0: #{land_use_mask_forward.3}
  #allocation0 [shape = 'u32[]', space=smem, size = 0x4, offset = 0x4, fixed_abs, tag = 'smem constant byte address 0x4 - core index']
  #allocation1 [shape = 'u32[72,128]{1,0:T(1,128)}', space=vmem, size = 0x9000, scoped, tag = 'internal scratch']
  %s0 = inlined_call_operand.vmem [shape: f32[2,4,256], index: 0, kind: input, shape index: {}]
  %s1 = inlined_call_operand.vmem [shape: f32[2,1,256], index: 1, kind: input, shape index: {}]
  %s2 = inlined_call_operand.vmem [shape: f32[2,4,256], index: 2, kind: output, shape index: {}]
  %s3 = sld [smem:[#allocation0]]
  $region41: #{land_use_mask_forward.3} parent=0
    _
  %s5 = ssub.s32 1, %s3
  %s6 = scalar_select 0, %s5, %s3
  loop: start=0, step=1, limit=4
  $region2: #{land_use_mask_forward.3} parent=0 // loop_pre_header
    _
  $region3: #{land_use_mask_forward.3} parent=0 // loop_header
    %s8 = sphi 0, %s12
    %p9 = scmp.ge.s32.totalorder %s8, 4
    %s15 = sphi 0, %s34
    %s16 = sphi 0, %s30
    %s17 = sphi 0, %s26
    %s18 = sphi 0, %s15
    %s19 = sphi 0, %s16
    %s20 = sphi 0, %s17
    %s21 = sphi 0, %s18
    %s22 = sphi 0, %s19
    %s23 = sphi 0, %s20
    %s41 = sphi 0, %s43
    %s44 = sphi 0, %s41
    %s45 = sphi 0, %s44
    %s61 = sphi 0, %s45
    %s69 = sphi 0, %s71
    %s72 = sphi 0, %s69
    %s73 = sphi 0, %s72
    %s89 = sphi 0, %s73
    %s99 = sphi 0, %s101
    %s102 = sphi 0, %s99
    %s103 = sphi 0, %s102
    %s119 = sphi 0, %s103
  $region4: #{land_use_mask_forward.3} parent=0 // loop_header_branch
    %11 = sbr.rel (%p9) target = $region8
  $region5: #{land_use_mask_forward.3} parent=0 // loop_body
    %s13 = ssub.s32 %s8, 1
    %s14 = ssub.s32 %s8, 2
    %s24 = sadd.s32 1, %s17
    %p25 = scmp.ge.s32.totalorder %s24, 1
    %s26 = scalar_select %p25, 0, %s24
    %s27 = sadd.s32 1, %s16
    %s28 = scalar_select %p25, %s27, %s16
    %p29 = scmp.ge.s32.totalorder %s28, 1
    %s30 = scalar_select %p29, 0, %s28
    %s31 = sadd.s32 1, %s15
    %s32 = scalar_select %p29, %s31, %s15
    %p33 = scmp.ge.s32.totalorder %s32, 2
    %s34 = scalar_select %p33, 0, %s32
    %s35 = ssub.s32 %s15, %s34
    %s36 = ssub.s32 %s16, %s30
    %s37 = sor.u32 %s35, %s36
    %s38 = ssub.s32 %s17, %s26
    %s39 = sor.u32 %s37, %s38
    %p40 = scmp.eq.s32.totalorder %s39, 0
    %s42 = sadd.s32 %s41, 1
    %s43 = scalar_select %p40, %s41, %s42
    %p46 = pneg %p40
    %p47 = scmp.eq.s32.totalorder %s8, 1
    %p48 = por %p46, %p47
    %p49 = scmp.ne.s32.totalorder %s41, %s44
    %p50 = scmp.eq.s32.totalorder %s8, 0
    %p51 = por %p49, %p50
    %p52 = scmp.ne.s32.totalorder %s41, %s44
    %p53 = scmp.eq.s32.totalorder %s13, 1
    %p54 = por %p52, %p53
    %p55 = scmp.ne.s32.totalorder %s44, %s45
    %p56 = scmp.eq.s32.totalorder %s13, 0
    %p57 = por %p55, %p56
    %p58 = scmp.ne.s32.totalorder %s44, %s45
    %p59 = scmp.eq.s32.totalorder %s14, 1
    %p60 = por %p58, %p59
    %p62 = scmp.ne.s32.totalorder %s45, %s61
    %p63 = scmp.eq.s32.totalorder %s14, 0
    %p64 = por %p62, %p63
    %s65 = ssub.s32 %s15, %s34
    %s66 = ssub.s32 %s17, %s26
    %s67 = sor.u32 %s65, %s66
    %p68 = scmp.eq.s32.totalorder %s67, 0
    %s70 = sadd.s32 %s69, 1
    %s71 = scalar_select %p68, %s69, %s70
    %p74 = pneg %p68
    %p75 = scmp.eq.s32.totalorder %s8, 1
    %p76 = por %p74, %p75
    %p77 = scmp.ne.s32.totalorder %s69, %s72
    %p78 = scmp.eq.s32.totalorder %s8, 0
    %p79 = por %p77, %p78
    %p80 = scmp.ne.s32.totalorder %s69, %s72
    %p81 = scmp.eq.s32.totalorder %s13, 1
    %p82 = por %p80, %p81
    %p83 = scmp.ne.s32.totalorder %s72, %s73
    %p84 = scmp.eq.s32.totalorder %s13, 0
    %p85 = por %p83, %p84
    %p86 = scmp.ne.s32.totalorder %s72, %s73
    %p87 = scmp.eq.s32.totalorder %s14, 1
    %p88 = por %p86, %p87
    %p90 = scmp.ne.s32.totalorder %s73, %s89
    %p91 = scmp.eq.s32.totalorder %s14, 0
    %p92 = por %p90, %p91
    %s93 = ssub.s32 %s15, %s34
    %s94 = ssub.s32 %s16, %s30
    %s95 = sor.u32 %s93, %s94
    %s96 = ssub.s32 %s17, %s26
    %s97 = sor.u32 %s95, %s96
    %p98 = scmp.eq.s32.totalorder %s97, 0
    %s100 = sadd.s32 %s99, 1
    %s101 = scalar_select %p98, %s99, %s100
    %p104 = pneg %p98
    %p105 = scmp.eq.s32.totalorder %s8, 1
    %p106 = por %p104, %p105
    %p107 = scmp.ne.s32.totalorder %s99, %s102
    %p108 = scmp.eq.s32.totalorder %s8, 0
    %p109 = por %p107, %p108
    %p110 = scmp.ne.s32.totalorder %s99, %s102
    %p111 = scmp.eq.s32.totalorder %s13, 1
    %p112 = por %p110, %p111
    %p113 = scmp.ne.s32.totalorder %s102, %s103
    %p114 = scmp.eq.s32.totalorder %s13, 0
    %p115 = por %p113, %p114
    %p116 = scmp.ne.s32.totalorder %s102, %s103
    %p117 = scmp.eq.s32.totalorder %s14, 1
    %p118 = por %p116, %p117
    %p120 = scmp.ne.s32.totalorder %s103, %s119
    %p121 = scmp.eq.s32.totalorder %s14, 0
    %p122 = por %p120, %p121
    %p123 = scmp.le.s32.totalorder 1, %s8
    %p124 = scmp.lt.s32.totalorder %s8, 3
    %p125 = pnand %p123, %p124
    %p126 = pneg %p125
    // Predicated region
    $region9: #{land_use_mask_forward.3} parent=5 // pred_check
      _
    $region10: #{land_use_mask_forward.3} parent=5 // pred_check_branch
      %128 = sbr.rel (%p125) target = $region12
    $region11: #{land_use_mask_forward.3} parent=5 // pred_region
      %s129 = ssub.s32 %s8, 1
    $region12: #{land_use_mask_forward.3} parent=5 // pred_fallthru
      _
    %p130 = scmp.lt.s32.totalorder %s8, 2
    // Predicated region
    $region13: #{land_use_mask_forward.3} parent=5 // pred_check
      %p131 = pneg %p130
    $region14: #{land_use_mask_forward.3} parent=5 // pred_check_branch
      %133 = sbr.rel (%p131) target = $region16
    $region15: #{land_use_mask_forward.3} parent=5 // pred_region
      // Predicated region
      $region17: #{land_use_mask_forward.3} parent=15 // pred_check
        %p134 = pneg %p51
      $region18: #{land_use_mask_forward.3} parent=15 // pred_check_branch
        %136 = sbr.rel (%p134) target = $region20
      $region19: #{land_use_mask_forward.3} parent=15 // pred_region
        %s137 = smul.u32 2, %s17
        %p138 = scmp.lt.s32.totalorder %s15, 1
        %s139 = scalar_select %p138, %s15, 1
        %p140 = scmp.lt.s32.totalorder %s16, 0
        %s141 = scalar_select %p140, %s16, 0
        %p142 = scmp.lt.s32.totalorder %s137, 1
        %s143 = scalar_select %p142, %s137, 1
        %s144 = smul.addr %s141, 2
        %s145 = sadd.s32 %s143, %s144
        %s146 = smul.addr %s139, 2
        %s147 = sadd.s32 %s145, %s146
        %s148 = smul.addr %s147, 4
        %s149 = scalar_lea.vmem %s0, %s148
        %s150 = smul.u32 2, %s17
      $region20: #{land_use_mask_forward.3} parent=15 // pred_fallthru
        _
      // Predicated region
      $region21: #{land_use_mask_forward.3} parent=15 // pred_check
        %p151 = pneg %p79
      $region22: #{land_use_mask_forward.3} parent=15 // pred_check_branch
        %153 = sbr.rel (%p151) target = $region24
      $region23: #{land_use_mask_forward.3} parent=15 // pred_region
        %s154 = smul.u32 2, %s17
        %p155 = scmp.lt.s32.totalorder %s15, 1
        %s156 = scalar_select %p155, %s15, 1
        %p157 = scmp.lt.s32.totalorder %s154, 1
        %s158 = scalar_select %p157, %s154, 1
        %s159 = smul.addr %s156, 2
        %s160 = sadd.s32 %s158, %s159
        %s161 = scalar_lea.vmem %s1, %s160
        %s162 = smul.u32 2, %s17
      $region24: #{land_use_mask_forward.3} parent=15 // pred_fallthru
        _
    $region16: #{land_use_mask_forward.3} parent=5 // pred_fallthru
      _
    %p163 = scmp.le.s32.totalorder 1, %s8
    %p164 = scmp.lt.s32.totalorder %s8, 3
    %p165 = pnand %p163, %p164
    %p166 = pneg %p165
    // Predicated region
    $region25: #{land_use_mask_forward.3} parent=5 // pred_check
      _
    $region26: #{land_use_mask_forward.3} parent=5 // pred_check_branch
      %168 = sbr.rel (%p165) target = $region28
    $region27: #{land_use_mask_forward.3} parent=5 // pred_region
      %s169 = ssub.s32 %s8, 1
      %s170 = smul.u32 2, %s20
      %p171 = scmp.lt.s32.totalorder %s18, 1
      %s172 = scalar_select %p171, %s18, 1
      %p173 = scmp.lt.s32.totalorder %s19, 0
      %s174 = scalar_select %p173, %s19, 0
      %p175 = scmp.lt.s32.totalorder %s170, 1
      %s176 = scalar_select %p175, %s170, 1
      %s177 = smul.addr %s174, 2
      %s178 = sadd.s32 %s176, %s177
      %s179 = smul.addr %s172, 2
      %s180 = sadd.s32 %s178, %s179
      %s181 = smul.addr %s180, 4
      %s182 = scalar_lea.vmem %s0, %s181
      %p183 = pneg %p57
      %p184 = pneg %p54
      %s185 = smul.u32 2, %s20
      %p186 = scmp.lt.s32.totalorder %s18, 1
      %s187 = scalar_select %p186, %s18, 1
      %p188 = scmp.lt.s32.totalorder %s185, 1
      %s189 = scalar_select %p188, %s185, 1
      %s190 = smul.addr %s187, 2
      %s191 = sadd.s32 %s189, %s190
      %s192 = scalar_lea.vmem %s1, %s191
      %p193 = pneg %p85
      %p194 = pneg %p82
      %p195 = pneg %p115
      %p196 = pneg %p112
      %s197 = smul.u32 2, %s20
      %p198 = scmp.lt.s32.totalorder %s18, 1
      %s199 = scalar_select %p198, %s18, 1
      %p200 = scmp.lt.s32.totalorder %s19, 0
      %s201 = scalar_select %p200, %s19, 0
      %p202 = scmp.lt.s32.totalorder %s197, 1
      %s203 = scalar_select %p202, %s197, 1
      %s204 = smul.addr %s201, 2
      %s205 = sadd.s32 %s203, %s204
      %s206 = smul.addr %s199, 2
      %s207 = sadd.s32 %s205, %s206
      %s208 = smul.addr %s207, 4
      %s209 = scalar_lea.vmem %s2, %s208
      %s210 = smul.u32 2, %s20
      %p211 = scmp.lt.s32.totalorder %s18, 1
      %s212 = scalar_select %p211, %s18, 1
      %p213 = scmp.lt.s32.totalorder %s19, 0
      %s214 = scalar_select %p213, %s19, 0
      %p215 = scmp.lt.s32.totalorder %s210, 1
      %s216 = scalar_select %p215, %s210, 1
      %s217 = smul.addr %s214, 2
      %s218 = sadd.s32 %s216, %s217
      %s219 = smul.addr %s212, 2
      %s220 = sadd.s32 %s218, %s219
      %s221 = smul.addr %s220, 4
      %s222 = scalar_lea.vmem %s0, %s221
      %s223 = smul.u32 2, %s20
      %s224 = smul.u32 2, %s20
      %p225 = scmp.lt.s32.totalorder %s18, 1
      %s226 = scalar_select %p225, %s18, 1
      %p227 = scmp.lt.s32.totalorder %s224, 1
      %s228 = scalar_select %p227, %s224, 1
      %s229 = smul.addr %s226, 2
      %s230 = sadd.s32 %s228, %s229
      %s231 = scalar_lea.vmem %s1, %s230
      %s232 = smul.u32 2, %s20
      %s233 = smul.u32 2, %s20
      %p234 = scmp.lt.s32.totalorder %s18, 1
      %s235 = scalar_select %p234, %s18, 1
      %p236 = scmp.lt.s32.totalorder %s19, 0
      %s237 = scalar_select %p236, %s19, 0
      %p238 = scmp.lt.s32.totalorder %s233, 1
      %s239 = scalar_select %p238, %s233, 1
      %s240 = smul.addr %s237, 2
      %s241 = sadd.s32 %s239, %s240
      %s242 = smul.addr %s235, 2
      %s243 = sadd.s32 %s241, %s242
      %s244 = smul.addr %s243, 4
      %s245 = scalar_lea.vmem %s2, %s244
      %s246 = smul.u32 2, %s20
      %v247 = vld [vmem:[%s222] sm:$0xff]
      %v248 = vld [vmem:[%s231] sm:$0x3]
      %v250 = vperm.slane %v248, 0
      %v251 = vperm.slane %v248, 1
      %v252 = vrot.slane %v251, 4
      %vm253 = vcmask 1043456
      %v254 = vsel %vm253, %v250, %v252
      %v256 = vmul.f32 %v247, %v254
      %257 = vst [vmem:[%s245] sm:$0xff] %v256
      %s258 = smul.u32 2, %s20
      %p259 = scmp.lt.s32.totalorder %s18, 1
      %s260 = scalar_select %p259, %s18, 1
      %p261 = scmp.lt.s32.totalorder %s19, 0
      %s262 = scalar_select %p261, %s19, 0
      %p263 = scmp.lt.s32.totalorder %s258, 1
      %s264 = scalar_select %p263, %s258, 1
      %s265 = smul.addr %s262, 2
      %s266 = sadd.s32 %s264, %s265
      %s267 = smul.addr %s260, 2
      %s268 = sadd.s32 %s266, %s267
      %s269 = smul.addr %s268, 4
      %s270 = scalar_lea.vmem %s2, %s269
      // Predicated region
      $region29: #{land_use_mask_forward.3} parent=27 // pred_check
        %p271 = pneg %p112
      $region30: #{land_use_mask_forward.3} parent=27 // pred_check_branch
        %273 = sbr.rel (%p271) target = $region32
      $region31: #{land_use_mask_forward.3} parent=27 // pred_region
        %s274 = smul.u32 2, %s20
      $region32: #{land_use_mask_forward.3} parent=27 // pred_fallthru
        _
    $region28: #{land_use_mask_forward.3} parent=5 // pred_fallthru
      _
    %p275 = scmp.le.s32.totalorder 2, %s8
    // Predicated region
    $region33: #{land_use_mask_forward.3} parent=5 // pred_check
      %p276 = pneg %p275
    $region34: #{land_use_mask_forward.3} parent=5 // pred_check_branch
      %278 = sbr.rel (%p276) target = $region36
    $region35: #{land_use_mask_forward.3} parent=5 // pred_region
      %s279 = ssub.s32 %s8, 2
      // Predicated region
      $region37: #{land_use_mask_forward.3} parent=35 // pred_check
        %p280 = pneg %p118
      $region38: #{land_use_mask_forward.3} parent=35 // pred_check_branch
        %282 = sbr.rel (%p280) target = $region40
      $region39: #{land_use_mask_forward.3} parent=35 // pred_region
        %s283 = smul.u32 2, %s23
        %p284 = scmp.lt.s32.totalorder %s21, 1
        %s285 = scalar_select %p284, %s21, 1
        %p286 = scmp.lt.s32.totalorder %s22, 0
        %s287 = scalar_select %p286, %s22, 0
        %p288 = scmp.lt.s32.totalorder %s283, 1
        %s289 = scalar_select %p288, %s283, 1
        %s290 = smul.addr %s287, 2
        %s291 = sadd.s32 %s289, %s290
        %s292 = smul.addr %s285, 2
        %s293 = sadd.s32 %s291, %s292
        %s294 = smul.addr %s293, 4
        %s295 = scalar_lea.vmem %s2, %s294
      $region40: #{land_use_mask_forward.3} parent=35 // pred_fallthru
        _
    $region36: #{land_use_mask_forward.3} parent=5 // pred_fallthru
      _
  $region6: #{land_use_mask_forward.3} parent=0 // loop_footer
    %s12 = sadd.s32 1, %s8
  $region7: #{land_use_mask_forward.3} parent=0 // loop_footer_branch
    %7 = sbr.rel target = $region3
  $region8: #{land_use_mask_forward.3} parent=0 // loop_exit
    _

// kernel: land_use_mask_forward.2
$region0: #{land_use_mask_forward.2}
  #allocation0 [shape = 'u32[]', space=smem, size = 0x4, offset = 0x4, fixed_abs, tag = 'smem constant byte address 0x4 - core index']
  #allocation1 [shape = 'u32[72,128]{1,0:T(1,128)}', space=vmem, size = 0x9000, scoped, tag = 'internal scratch']
  %s0 = inlined_call_operand.vmem [shape: f32[2,1,20,20], index: 0, kind: input, shape index: {}]
  %s1 = inlined_call_operand.vmem [shape: f32[81], index: 1, kind: input, shape index: {}]
  %s2 = inlined_call_operand.vmem [shape: f32[10], index: 2, kind: input, shape index: {}]
  %s3 = inlined_call_operand.vmem [shape: f32[2,16,16], index: 3, kind: output, shape index: {}]
  %s4 = sld [smem:[#allocation0]]
  $region53: #{land_use_mask_forward.2} parent=0
    _
  %s6 = ssub.s32 1, %s4
  %s7 = scalar_select 0, %s6, %s4
  $region1: #{land_use_mask_forward.2} parent=0
    #allocation2 [shape = 'u8[512]{0}', space=smem, size = 0x200, scoped, tag = 'input window, operand 1, single buffered']
    #allocation3 [shape = 's32[2]{0}', space=sflag, size = 0x8, scoped, tag = 'scoped memory for land_use_mask_forward.2']
    #allocation4 [shape = 'u8[512]{0}', space=smem, size = 0x200, scoped, tag = 'input window, operand 2, single buffered']
    #allocation5 [shape = 's32[1]{0}', space=sflag, size = 0x4, scoped, tag = 'scoped memory for land_use_mask_forward.2']
    %8 = vsyncpa [#allocation3], 0
    %9 = vsyncpa [#allocation5], 0
    loop: start=0, step=1, limit=4
    $region2: #{land_use_mask_forward.2} parent=1 // loop_pre_header
      _
    $region3: #{land_use_mask_forward.2} parent=1 // loop_header
      %s11 = sphi 0, %s15
      %p12 = scmp.ge.s32.totalorder %s11, 4
      %s18 = sphi 0, %s30
      %s19 = sphi 0, %s26
      %s20 = sphi 0, %s18
      %s21 = sphi 0, %s19
      %s22 = sphi 0, %s20
      %s23 = sphi 0, %s21
      %s33 = sphi 0, %s35
      %s36 = sphi 0, %s33
      %s37 = sphi 0, %s36
      %s53 = sphi 0, %s37
      %s57 = sphi 0, %s57
      %s59 = sphi 0, %s57
      %s60 = sphi 0, %s59
      %s74 = sphi 0, %s60
      %s78 = sphi 0, %s78
      %s80 = sphi 0, %s78
      %s81 = sphi 0, %s80
      %s95 = sphi 0, %s81
      %s103 = sphi 0, %s105
      %s106 = sphi 0, %s103
      %s107 = sphi 0, %s106
      %s123 = sphi 0, %s107
    $region4: #{land_use_mask_forward.2} parent=1 // loop_header_branch
      %14 = sbr.rel (%p12) target = $region8
    $region5: #{land_use_mask_forward.2} parent=1 // loop_body
      %s16 = ssub.s32 %s11, 1
      %s17 = ssub.s32 %s11, 2
      %s24 = sadd.s32 1, %s19
      %p25 = scmp.ge.s32.totalorder %s24, 1
      %s26 = scalar_select %p25, 0, %s24
      %s27 = sadd.s32 1, %s18
      %s28 = scalar_select %p25, %s27, %s18
      %p29 = scmp.ge.s32.totalorder %s28, 2
      %s30 = scalar_select %p29, 0, %s28
      %s31 = ssub.s32 %s18, %s30
      %p32 = scmp.eq.s32.totalorder %s31, 0
      %s34 = sadd.s32 %s33, 1
      %s35 = scalar_select %p32, %s33, %s34
      %p38 = pneg %p32
      %p39 = scmp.eq.s32.totalorder %s11, 1
      %p40 = por %p38, %p39
      %p41 = scmp.ne.s32.totalorder %s33, %s36
      %p42 = scmp.eq.s32.totalorder %s11, 0
      %p43 = por %p41, %p42
      %p44 = scmp.ne.s32.totalorder %s33, %s36
      %p45 = scmp.eq.s32.totalorder %s16, 1
      %p46 = por %p44, %p45
      %p47 = scmp.ne.s32.totalorder %s36, %s37
      %p48 = scmp.eq.s32.totalorder %s16, 0
      %p49 = por %p47, %p48
      %p50 = scmp.ne.s32.totalorder %s36, %s37
      %p51 = scmp.eq.s32.totalorder %s17, 1
      %p52 = por %p50, %p51
      %p54 = scmp.ne.s32.totalorder %s37, %s53
      %p55 = scmp.eq.s32.totalorder %s17, 0
      %p56 = por %p54, %p55
      %s58 = sadd.s32 %s57, 1
      %p61 = scmp.eq.s32.totalorder %s11, 1
      %p62 = scmp.ne.s32.totalorder %s57, %s59
      %p63 = scmp.eq.s32.totalorder %s11, 0
      %p64 = por %p62, %p63
      %p65 = scmp.ne.s32.totalorder %s57, %s59
      %p66 = scmp.eq.s32.totalorder %s16, 1
      %p67 = por %p65, %p66
      %p68 = scmp.ne.s32.totalorder %s59, %s60
      %p69 = scmp.eq.s32.totalorder %s16, 0
      %p70 = por %p68, %p69
      %p71 = scmp.ne.s32.totalorder %s59, %s60
      %p72 = scmp.eq.s32.totalorder %s17, 1
      %p73 = por %p71, %p72
      %p75 = scmp.ne.s32.totalorder %s60, %s74
      %p76 = scmp.eq.s32.totalorder %s17, 0
      %p77 = por %p75, %p76
      %s79 = sadd.s32 %s78, 1
      %p82 = scmp.eq.s32.totalorder %s11, 1
      %p83 = scmp.ne.s32.totalorder %s78, %s80
      %p84 = scmp.eq.s32.totalorder %s11, 0
      %p85 = por %p83, %p84
      %p86 = scmp.ne.s32.totalorder %s78, %s80
      %p87 = scmp.eq.s32.totalorder %s16, 1
      %p88 = por %p86, %p87
      %p89 = scmp.ne.s32.totalorder %s80, %s81
      %p90 = scmp.eq.s32.totalorder %s16, 0
      %p91 = por %p89, %p90
      %p92 = scmp.ne.s32.totalorder %s80, %s81
      %p93 = scmp.eq.s32.totalorder %s17, 1
      %p94 = por %p92, %p93
      %p96 = scmp.ne.s32.totalorder %s81, %s95
      %p97 = scmp.eq.s32.totalorder %s17, 0
      %p98 = por %p96, %p97
      %s99 = ssub.s32 %s18, %s30
      %s100 = ssub.s32 %s19, %s26
      %s101 = sor.u32 %s99, %s100
      %p102 = scmp.eq.s32.totalorder %s101, 0
      %s104 = sadd.s32 %s103, 1
      %s105 = scalar_select %p102, %s103, %s104
      %p108 = pneg %p102
      %p109 = scmp.eq.s32.totalorder %s11, 1
      %p110 = por %p108, %p109
      %p111 = scmp.ne.s32.totalorder %s103, %s106
      %p112 = scmp.eq.s32.totalorder %s11, 0
      %p113 = por %p111, %p112
      %p114 = scmp.ne.s32.totalorder %s103, %s106
      %p115 = scmp.eq.s32.totalorder %s16, 1
      %p116 = por %p114, %p115
      %p117 = scmp.ne.s32.totalorder %s106, %s107
      %p118 = scmp.eq.s32.totalorder %s16, 0
      %p119 = por %p117, %p118
      %p120 = scmp.ne.s32.totalorder %s106, %s107
      %p121 = scmp.eq.s32.totalorder %s17, 1
      %p122 = por %p120, %p121
      %p124 = scmp.ne.s32.totalorder %s107, %s123
      %p125 = scmp.eq.s32.totalorder %s17, 0
      %p126 = por %p124, %p125
      %p127 = scmp.le.s32.totalorder 1, %s11
      %p128 = scmp.lt.s32.totalorder %s11, 3
      %p129 = pnand %p127, %p128
      %p130 = pneg %p129
      // Predicated region
      $region9: #{land_use_mask_forward.2} parent=5 // pred_check
        _
      $region10: #{land_use_mask_forward.2} parent=5 // pred_check_branch
        %132 = sbr.rel (%p129) target = $region12
      $region11: #{land_use_mask_forward.2} parent=5 // pred_region
        %s133 = ssub.s32 %s11, 1
        // Predicated region
        $region13: #{land_use_mask_forward.2} parent=11 // pred_check
          %p134 = pneg %p70
        $region14: #{land_use_mask_forward.2} parent=11 // pred_check_branch
          %136 = sbr.rel (%p134) target = $region16
        $region15: #{land_use_mask_forward.2} parent=11 // pred_region
          %138 = vsyncadd [#allocation3], 0
          %s140 = sshll.u32 %s1, 4
          %s141 = int_to_ptr.vmem [resolvable:$true] %s140
          %143 = dma.vmem_to_smem %s141, 16, [#allocation2], [#allocation3]
        $region16: #{land_use_mask_forward.2} parent=11 // pred_fallthru
          _
        // Predicated region
        $region17: #{land_use_mask_forward.2} parent=11 // pred_check
          %p144 = pneg %p91
        $region18: #{land_use_mask_forward.2} parent=11 // pred_check_branch
          %146 = sbr.rel (%p144) target = $region20
        $region19: #{land_use_mask_forward.2} parent=11 // pred_region
          %148 = vsyncadd [#allocation5], 0
          %s150 = sshll.u32 %s2, 4
          %s151 = int_to_ptr.vmem [resolvable:$true] %s150
          %153 = dma.vmem_to_smem %s151, 16, [#allocation4], [#allocation5]
        $region20: #{land_use_mask_forward.2} parent=11 // pred_fallthru
          _
      $region12: #{land_use_mask_forward.2} parent=5 // pred_fallthru
        _
      %p154 = scmp.lt.s32.totalorder %s11, 2
      // Predicated region
      $region21: #{land_use_mask_forward.2} parent=5 // pred_check
        %p155 = pneg %p154
      $region22: #{land_use_mask_forward.2} parent=5 // pred_check_branch
        %157 = sbr.rel (%p155) target = $region24
      $region23: #{land_use_mask_forward.2} parent=5 // pred_region
        // Predicated region
        $region25: #{land_use_mask_forward.2} parent=23 // pred_check
          %p158 = pneg %p43
        $region26: #{land_use_mask_forward.2} parent=23 // pred_check_branch
          %160 = sbr.rel (%p158) target = $region28
        $region27: #{land_use_mask_forward.2} parent=23 // pred_region
          %p161 = scmp.lt.s32.totalorder %s18, 1
          %s162 = scalar_select %p161, %s18, 1
          %s163 = smul.addr %s162, 3
          %s164 = smul.addr %s163, 8
          %s165 = scalar_lea.vmem %s0, %s164
        $region28: #{land_use_mask_forward.2} parent=23 // pred_fallthru
          _
      $region24: #{land_use_mask_forward.2} parent=5 // pred_fallthru
        _
      %p166 = scmp.le.s32.totalorder 1, %s11
      %p167 = scmp.lt.s32.totalorder %s11, 3
      %p168 = pnand %p166, %p167
      %p169 = pneg %p168
      // Predicated region
      $region29: #{land_use_mask_forward.2} parent=5 // pred_check
        _
      $region30: #{land_use_mask_forward.2} parent=5 // pred_check_branch
        %171 = sbr.rel (%p168) target = $region32
      $region31: #{land_use_mask_forward.2} parent=5 // pred_region
        %s172 = ssub.s32 %s11, 1
        // Predicated region
        $region33: #{land_use_mask_forward.2} parent=31 // pred_check
          %p173 = pneg %p70
        $region34: #{land_use_mask_forward.2} parent=31 // pred_check_branch
          %175 = sbr.rel (%p173) target = $region36
        $region35: #{land_use_mask_forward.2} parent=31 // pred_region
          %177 = dma.done [#allocation3], 16
        $region36: #{land_use_mask_forward.2} parent=31 // pred_fallthru
          _
        // Predicated region
        $region37: #{land_use_mask_forward.2} parent=31 // pred_check
          %p178 = pneg %p91
        $region38: #{land_use_mask_forward.2} parent=31 // pred_check_branch
          %180 = sbr.rel (%p178) target = $region40
        $region39: #{land_use_mask_forward.2} parent=31 // pred_region
          %182 = dma.done [#allocation5], 16
        $region40: #{land_use_mask_forward.2} parent=31 // pred_fallthru
          _
        %183 = sfence
        %p184 = scmp.lt.s32.totalorder %s20, 1
        %s185 = scalar_select %p184, %s20, 1
        %s186 = smul.addr %s185, 3
        %s187 = smul.addr %s186, 8
        %s188 = scalar_lea.vmem %s0, %s187
        %p189 = pneg %p49
        %p190 = pneg %p46
        %p191 = pneg %p70
        %p192 = pneg %p67
        %p193 = pneg %p91
        %p194 = pneg %p88
        %p195 = pneg %p119
        %p196 = pneg %p116
        %s197 = smul.u32 2, %s21
        %p198 = scmp.lt.s32.totalorder %s20, 1
        %s199 = scalar_select %p198, %s20, 1
        %p200 = scmp.lt.s32.totalorder %s197, 1
        %s201 = scalar_select %p200, %s197, 1
        %s202 = smul.addr %s199, 2
        %s203 = sadd.s32 %s201, %s202
        %s204 = smul.addr %s203, 8
        %s205 = scalar_lea.vmem %s3, %s204
        %p206 = scmp.lt.s32.totalorder %s20, 1
        %s207 = scalar_select %p206, %s20, 1
        %s208 = smul.addr %s207, 3
        %s209 = smul.addr %s208, 8
        %s210 = scalar_lea.vmem %s0, %s209
        %s211 = smul.u32 2, %s21
        %p212 = scmp.lt.s32.totalorder %s20, 1
        %s213 = scalar_select %p212, %s20, 1
        %p214 = scmp.lt.s32.totalorder %s211, 1
        %s215 = scalar_select %p214, %s211, 1
        %s216 = smul.addr %s213, 2
        %s217 = sadd.s32 %s215, %s216
        %s218 = smul.addr %s217, 8
        %s219 = scalar_lea.vmem %s3, %s218
        %s220 = smul.u32 2, %s21
        %s221 = smul.u32 %s21, 16
        %v222 = vlaneseq
        %v223 = vshrl.u32 %v222, 7
        %v224 = vadd.s32 %v223, 8
        %v225 = vstv %s221
        %v226 = vadd.s32 %v223, %v225
        %v227 = vadd.s32 %v224, %v225
        %v228 = vlaneseq
        %v229 = vand.u32 %v228, 127
        %vm230 = vcmp.ge.s32.totalorder %v226, 1
        %vm231 = vcmp.ge.s32.totalorder %v227, 1
        %vm232 = vcmp.le.s32.totalorder %v226, 14
        %vm233 = vcmp.le.s32.totalorder %v227, 14
        %vm234 = vcmp.ge.s32.totalorder %v229, 1
        %vm235 = vcmp.le.s32.totalorder %v229, 14
        %s236 = sld [smem:[#allocation4 + $0x9]]
        %v237 = vstv %s236
        %s238 = sld [smem:[#allocation4]]
        %v239 = vstv %s238
        %s240 = scalar_lea.vmem %s210, %s221
        %v241 = vld [vmem:[%s240] sm:$0xff]
        %v242 = vld [vmem:[%s240 + $0x8] sm:$0xff]
        %s243 = sld [smem:[#allocation2]]
        %v244 = vstv %s243
        %v245 = vmul.f32 %v244, %v241
        %v246 = vmul.f32 %v244, %v242
        %v247 = vadd.f32 %v239, %v245
        %v248 = vadd.f32 %v239, %v246
        %s249 = sld [smem:[#allocation2 + $0x1]]
        %v250 = vstv %s249
        %v251 = vmul.f32 %v250, %v241
        %v252 = vmul.f32 %v250, %v242
        %255 = vrot.lane.b32.xlu0 %v251, 127
        %v256 = vpop.permute.xlu0 %255
        %257 = vrot.lane.b32.xlu0 %v252, 127
        %v258 = vpop.permute.xlu0 %257
        %v261 = vadd.f32 %v247, %v256
        %v262 = vadd.f32 %v248, %v258
        %s263 = sld [smem:[#allocation2 + $0x2]]
        %v264 = vstv %s263
        %v265 = vmul.f32 %v264, %v241
        %v266 = vmul.f32 %v264, %v242
        %269 = vrot.lane.b32.xlu0 %v265, 126
        %v270 = vpop.permute.xlu0 %269
        %271 = vrot.lane.b32.xlu0 %v266, 126
        %v272 = vpop.permute.xlu0 %271
        %v275 = vadd.f32 %v261, %v270
        %v276 = vadd.f32 %v262, %v272
        %s277 = sadd.s32 %s221, 1
        %s278 = scalar_lea.vmem %s210, %s277
        %v279 = vld [vmem:[%s278] sm:$0xff]
        %v280 = vld [vmem:[%s278 + $0x8] sm:$0xff]
        %s281 = sld [smem:[#allocation2 + $0x3]]
        %v282 = vstv %s281
        %v283 = vmul.f32 %v282, %v279
        %v284 = vmul.f32 %v282, %v280
        %v285 = vadd.f32 %v275, %v283
        %v286 = vadd.f32 %v276, %v284
        %s287 = sld [smem:[#allocation2 + $0x4]]
        %v288 = vstv %s287
        %v289 = vmul.f32 %v288, %v279
        %v290 = vmul.f32 %v288, %v280
        %293 = vrot.lane.b32.xlu0 %v289, 127
        %v294 = vpop.permute.xlu0 %293
        %295 = vrot.lane.b32.xlu0 %v290, 127
        %v296 = vpop.permute.xlu0 %295
        %v299 = vadd.f32 %v285, %v294
        %v300 = vadd.f32 %v286, %v296
        %s301 = sld [smem:[#allocation2 + $0x5]]
        %v302 = vstv %s301
        %v303 = vmul.f32 %v302, %v279
        %v304 = vmul.f32 %v302, %v280
        %307 = vrot.lane.b32.xlu0 %v303, 126
        %v308 = vpop.permute.xlu0 %307
        %309 = vrot.lane.b32.xlu0 %v304, 126
        %v310 = vpop.permute.xlu0 %309
        %v313 = vadd.f32 %v299, %v308
        %v314 = vadd.f32 %v300, %v310
        %s315 = sadd.s32 %s221, 2
        %s316 = scalar_lea.vmem %s210, %s315
        %v317 = vld [vmem:[%s316] sm:$0xff]
        %v318 = vld [vmem:[%s316 + $0x8] sm:$0xff]
        %s319 = sld [smem:[#allocation2 + $0x6]]
        %v320 = vstv %s319
        %v321 = vmul.f32 %v320, %v317
        %v322 = vmul.f32 %v320, %v318
        %v323 = vadd.f32 %v313, %v321
        %v324 = vadd.f32 %v314, %v322
        %s325 = sld [smem:[#allocation2 + $0x7]]
        %v326 = vstv %s325
        %v327 = vmul.f32 %v326, %v317
        %v328 = vmul.f32 %v326, %v318
        %331 = vrot.lane.b32.xlu0 %v327, 127
        %v332 = vpop.permute.xlu0 %331
        %333 = vrot.lane.b32.xlu0 %v328, 127
        %v334 = vpop.permute.xlu0 %333
        %v337 = vadd.f32 %v323, %v332
        %v338 = vadd.f32 %v324, %v334
        %s339 = sld [smem:[#allocation2 + $0x8]]
        %v340 = vstv %s339
        %v341 = vmul.f32 %v340, %v317
        %v342 = vmul.f32 %v340, %v318
        %345 = vrot.lane.b32.xlu0 %v341, 126
        %v346 = vpop.permute.xlu0 %345
        %347 = vrot.lane.b32.xlu0 %v342, 126
        %v348 = vpop.permute.xlu0 %347
        %v351 = vadd.f32 %v337, %v346
        %v352 = vadd.f32 %v338, %v348
        %vm353 = vmand %vm230, %vm234
        %vm354 = vmand %vm231, %vm234
        %v355 = vsel %vm353, %v351, 0.0
        %v356 = vsel %vm354, %v352, 0.0
        %v357 = vadd.f32 %v237, %v355
        %v358 = vadd.f32 %v237, %v356
        %s359 = sld [smem:[#allocation4 + $0x1]]
        %v360 = vstv %s359
        %s361 = sld [smem:[#allocation2 + $0x9]]
        %v362 = vstv %s361
        %v363 = vmul.f32 %v362, %v241
        %v364 = vmul.f32 %v362, %v242
        %v365 = vadd.f32 %v360, %v363
        %v366 = vadd.f32 %v360, %v364
        %s367 = sld [smem:[#allocation2 + $0xa]]
        %v368 = vstv %s367
        %v369 = vmul.f32 %v368, %v241
        %v370 = vmul.f32 %v368, %v242
        %373 = vrot.lane.b32.xlu0 %v369, 127
        %v374 = vpop.permute.xlu0 %373
        %375 = vrot.lane.b32.xlu0 %v370, 127
        %v376 = vpop.permute.xlu0 %375
        %v379 = vadd.f32 %v365, %v374
        %v380 = vadd.f32 %v366, %v376
        %s381 = sld [smem:[#allocation2 + $0xb]]
        %v382 = vstv %s381
        %v383 = vmul.f32 %v382, %v241
        %v384 = vmul.f32 %v382, %v242
        %387 = vrot.lane.b32.xlu0 %v383, 126
        %v388 = vpop.permute.xlu0 %387
        %389 = vrot.lane.b32.xlu0 %v384, 126
        %v390 = vpop.permute.xlu0 %389
        %v393 = vadd.f32 %v379, %v388
        %v394 = vadd.f32 %v380, %v390
        %s395 = sld [smem:[#allocation2 + $0xc]]
        %v396 = vstv %s395
        %v397 = vmul.f32 %v396, %v279
        %v398 = vmul.f32 %v396, %v280
        %v399 = vadd.f32 %v393, %v397
        %v400 = vadd.f32 %v394, %v398
        %s401 = sld [smem:[#allocation2 + $0xd]]
        %v402 = vstv %s401
        %v403 = vmul.f32 %v402, %v279
        %v404 = vmul.f32 %v402, %v280
        %407 = vrot.lane.b32.xlu0 %v403, 127
        %v408 = vpop.permute.xlu0 %407
        %409 = vrot.lane.b32.xlu0 %v404, 127
        %v410 = vpop.permute.xlu0 %409
        %v413 = vadd.f32 %v399, %v408
        %v414 = vadd.f32 %v400, %v410
        %s415 = sld [smem:[#allocation2 + $0xe]]
        %v416 = vstv %s415
        %v417 = vmul.f32 %v416, %v279
        %v418 = vmul.f32 %v416, %v280
        %421 = vrot.lane.b32.xlu0 %v417, 126
        %v422 = vpop.permute.xlu0 %421
        %423 = vrot.lane.b32.xlu0 %v418, 126
        %v424 = vpop.permute.xlu0 %423
        %v427 = vadd.f32 %v413, %v422
        %v428 = vadd.f32 %v414, %v424
        %s429 = sld [smem:[#allocation2 + $0xf]]
        %v430 = vstv %s429
        %v431 = vmul.f32 %v430, %v317
        %v432 = vmul.f32 %v430, %v318
        %v433 = vadd.f32 %v427, %v431
        %v434 = vadd.f32 %v428, %v432
        %s435 = sld [smem:[#allocation2 + $0x10]]
        %v436 = vstv %s435
        %v437 = vmul.f32 %v436, %v317
        %v438 = vmul.f32 %v436, %v318
        %441 = vrot.lane.b32.xlu0 %v437, 127
        %v442 = vpop.permute.xlu0 %441
        %443 = vrot.lane.b32.xlu0 %v438, 127
        %v444 = vpop.permute.xlu0 %443
        %v447 = vadd.f32 %v433, %v442
        %v448 = vadd.f32 %v434, %v444
        %s449 = sld [smem:[#allocation2 + $0x11]]
        %v450 = vstv %s449
        %v451 = vmul.f32 %v450, %v317
        %v452 = vmul.f32 %v450, %v318
        %455 = vrot.lane.b32.xlu0 %v451, 126
        %v456 = vpop.permute.xlu0 %455
        %457 = vrot.lane.b32.xlu0 %v452, 126
        %v458 = vpop.permute.xlu0 %457
        %v461 = vadd.f32 %v447, %v456
        %v462 = vadd.f32 %v448, %v458
        %v463 = vsel %vm230, %v461, 0.0
        %v464 = vsel %vm231, %v462, 0.0
        %467 = vrot.lane.b32.xlu0 %v463, 127
        %v468 = vpop.permute.xlu0 %467
        %469 = vrot.lane.b32.xlu0 %v464, 127
        %v470 = vpop.permute.xlu0 %469
        %v473 = vadd.f32 %v357, %v468
        %v474 = vadd.f32 %v358, %v470
        %s475 = sld [smem:[#allocation4 + $0x2]]
        %v476 = vstv %s475
        %s477 = sld [smem:[#allocation2 + $0x12]]
        %v478 = vstv %s477
        %v479 = vmul.f32 %v478, %v241
        %v480 = vmul.f32 %v478, %v242
        %v481 = vadd.f32 %v476, %v479
        %v482 = vadd.f32 %v476, %v480
        %s483 = sld [smem:[#allocation2 + $0x13]]
        %v484 = vstv %s483
        %v485 = vmul.f32 %v484, %v241
        %v486 = vmul.f32 %v484, %v242
        %489 = vrot.lane.b32.xlu0 %v485, 127
        %v490 = vpop.permute.xlu0 %489
        %491 = vrot.lane.b32.xlu0 %v486, 127
        %v492 = vpop.permute.xlu0 %491
        %v495 = vadd.f32 %v481, %v490
        %v496 = vadd.f32 %v482, %v492
        %s497 = sld [smem:[#allocation2 + $0x14]]
        %v498 = vstv %s497
        %v499 = vmul.f32 %v498, %v241
        %v500 = vmul.f32 %v498, %v242
        %503 = vrot.lane.b32.xlu0 %v499, 126
        %v504 = vpop.permute.xlu0 %503
        %505 = vrot.lane.b32.xlu0 %v500, 126
        %v506 = vpop.permute.xlu0 %505
        %v509 = vadd.f32 %v495, %v504
        %v510 = vadd.f32 %v496, %v506
        %s511 = sld [smem:[#allocation2 + $0x15]]
        %v512 = vstv %s511
        %v513 = vmul.f32 %v512, %v279
        %v514 = vmul.f32 %v512, %v280
        %v515 = vadd.f32 %v509, %v513
        %v516 = vadd.f32 %v510, %v514
        %s517 = sld [smem:[#allocation2 + $0x16]]
        %v518 = vstv %s517
        %v519 = vmul.f32 %v518, %v279
        %v520 = vmul.f32 %v518, %v280
        %523 = vrot.lane.b32.xlu0 %v519, 127
        %v524 = vpop.permute.xlu0 %523
        %525 = vrot.lane.b32.xlu0 %v520, 127
        %v526 = vpop.permute.xlu0 %525
        %v529 = vadd.f32 %v515, %v524
        %v530 = vadd.f32 %v516, %v526
        %s531 = sld [smem:[#allocation2 + $0x17]]
        %v532 = vstv %s531
        %v533 = vmul.f32 %v532, %v279
        %v534 = vmul.f32 %v532, %v280
        %537 = vrot.lane.b32.xlu0 %v533, 126
        %v538 = vpop.permute.xlu0 %537
        %539 = vrot.lane.b32.xlu0 %v534, 126
        %v540 = vpop.permute.xlu0 %539
        %v543 = vadd.f32 %v529, %v538
        %v544 = vadd.f32 %v530, %v540
        %s545 = sld [smem:[#allocation2 + $0x18]]
        %v546 = vstv %s545
        %v547 = vmul.f32 %v546, %v317
        %v548 = vmul.f32 %v546, %v318
        %v549 = vadd.f32 %v543, %v547
        %v550 = vadd.f32 %v544, %v548
        %s551 = sld [smem:[#allocation2 + $0x19]]
        %v552 = vstv %s551
        %v553 = vmul.f32 %v552, %v317
        %v554 = vmul.f32 %v552, %v318
        %557 = vrot.lane.b32.xlu0 %v553, 127
        %v558 = vpop.permute.xlu0 %557
        %559 = vrot.lane.b32.xlu0 %v554, 127
        %v560 = vpop.permute.xlu0 %559
        %v563 = vadd.f32 %v549, %v558
        %v564 = vadd.f32 %v550, %v560
        %s565 = sld [smem:[#allocation2 + $0x1a]]
        %v566 = vstv %s565
        %v567 = vmul.f32 %v566, %v317
        %v568 = vmul.f32 %v566, %v318
        %571 = vrot.lane.b32.xlu0 %v567, 126
        %v572 = vpop.permute.xlu0 %571
        %573 = vrot.lane.b32.xlu0 %v568, 126
        %v574 = vpop.permute.xlu0 %573
        %v577 = vadd.f32 %v563, %v572
        %v578 = vadd.f32 %v564, %v574
        %vm579 = vmand %vm230, %vm235
        %vm580 = vmand %vm231, %vm235
        %583 = vrot.lane.b32.xlu0 %v577, 126
        %v584 = vpop.permute.xlu0 %583
        %585 = vrot.lane.b32.xlu0 %v578, 126
        %v586 = vpop.permute.xlu0 %585
        %v589 = vsel %vm579, %v584, 0.0
        %v590 = vsel %vm580, %v586, 0.0
        %v591 = vadd.f32 %v473, %v589
        %v592 = vadd.f32 %v474, %v590
        %s593 = sld [smem:[#allocation4 + $0x3]]
        %v594 = vstv %s593
        %s595 = sld [smem:[#allocation2 + $0x1b]]
        %v596 = vstv %s595
        %v597 = vmul.f32 %v596, %v279
        %v598 = vmul.f32 %v596, %v280
        %v599 = vadd.f32 %v594, %v597
        %v600 = vadd.f32 %v594, %v598
        %s601 = sld [smem:[#allocation2 + $0x1c]]
        %v602 = vstv %s601
        %v603 = vmul.f32 %v602, %v279
        %v604 = vmul.f32 %v602, %v280
        %607 = vrot.lane.b32.xlu0 %v603, 127
        %v608 = vpop.permute.xlu0 %607
        %609 = vrot.lane.b32.xlu0 %v604, 127
        %v610 = vpop.permute.xlu0 %609
        %v613 = vadd.f32 %v599, %v608
        %v614 = vadd.f32 %v600, %v610
        %s615 = sld [smem:[#allocation2 + $0x1d]]
        %v616 = vstv %s615
        %v617 = vmul.f32 %v616, %v279
        %v618 = vmul.f32 %v616, %v280
        %621 = vrot.lane.b32.xlu0 %v617, 126
        %v622 = vpop.permute.xlu0 %621
        %623 = vrot.lane.b32.xlu0 %v618, 126
        %v624 = vpop.permute.xlu0 %623
        %v627 = vadd.f32 %v613, %v622
        %v628 = vadd.f32 %v614, %v624
        %s629 = sld [smem:[#allocation2 + $0x1e]]
        %v630 = vstv %s629
        %v631 = vmul.f32 %v630, %v317
        %v632 = vmul.f32 %v630, %v318
        %v633 = vadd.f32 %v627, %v631
        %v634 = vadd.f32 %v628, %v632
        %s635 = sld [smem:[#allocation2 + $0x1f]]
        %v636 = vstv %s635
        %v637 = vmul.f32 %v636, %v317
        %v638 = vmul.f32 %v636, %v318
        %641 = vrot.lane.b32.xlu0 %v637, 127
        %v642 = vpop.permute.xlu0 %641
        %643 = vrot.lane.b32.xlu0 %v638, 127
        %v644 = vpop.permute.xlu0 %643
        %v647 = vadd.f32 %v633, %v642
        %v648 = vadd.f32 %v634, %v644
        %s649 = sld [smem:[#allocation2 + $0x20]]
        %v650 = vstv %s649
        %v651 = vmul.f32 %v650, %v317
        %v652 = vmul.f32 %v650, %v318
        %655 = vrot.lane.b32.xlu0 %v651, 126
        %v656 = vpop.permute.xlu0 %655
        %657 = vrot.lane.b32.xlu0 %v652, 126
        %v658 = vpop.permute.xlu0 %657
        %v661 = vadd.f32 %v647, %v656
        %v662 = vadd.f32 %v648, %v658
        %s663 = sadd.s32 %s221, 3
        %s664 = scalar_lea.vmem %s210, %s663
        %v665 = vld [vmem:[%s664] sm:$0xff]
        %v666 = vld [vmem:[%s664 + $0x8] sm:$0xff]
        %s667 = sld [smem:[#allocation2 + $0x21]]
        %v668 = vstv %s667
        %v669 = vmul.f32 %v668, %v665
        %v670 = vmul.f32 %v668, %v666
        %v671 = vadd.f32 %v661, %v669
        %v672 = vadd.f32 %v662, %v670
        %s673 = sld [smem:[#allocation2 + $0x22]]
        %v674 = vstv %s673
        %v675 = vmul.f32 %v674, %v665
        %v676 = vmul.f32 %v674, %v666
        %679 = vrot.lane.b32.xlu0 %v675, 127
        %v680 = vpop.permute.xlu0 %679
        %681 = vrot.lane.b32.xlu0 %v676, 127
        %v682 = vpop.permute.xlu0 %681
        %v685 = vadd.f32 %v671, %v680
        %v686 = vadd.f32 %v672, %v682
        %s687 = sld [smem:[#allocation2 + $0x23]]
        %v688 = vstv %s687
        %v689 = vmul.f32 %v688, %v665
        %v690 = vmul.f32 %v688, %v666
        %693 = vrot.lane.b32.xlu0 %v689, 126
        %v694 = vpop.permute.xlu0 %693
        %695 = vrot.lane.b32.xlu0 %v690, 126
        %v696 = vpop.permute.xlu0 %695
        %v699 = vadd.f32 %v685, %v694
        %v700 = vadd.f32 %v686, %v696
        %v701 = vsel %vm234, %v699, 0.0
        %v702 = vsel %vm234, %v700, 0.0
        %v703 = vadd.f32 %v591, %v701
        %v704 = vadd.f32 %v592, %v702
        %s705 = sld [smem:[#allocation4 + $0x4]]
        %v706 = vstv %s705
        %s707 = sld [smem:[#allocation2 + $0x24]]
        %v708 = vstv %s707
        %v709 = vmul.f32 %v708, %v279
        %v710 = vmul.f32 %v708, %v280
        %v711 = vadd.f32 %v706, %v709
        %v712 = vadd.f32 %v706, %v710
        %s713 = sld [smem:[#allocation2 + $0x25]]
        %v714 = vstv %s713
        %v715 = vmul.f32 %v714, %v279
        %v716 = vmul.f32 %v714, %v280
        %719 = vrot.lane.b32.xlu0 %v715, 127
        %v720 = vpop.permute.xlu0 %719
        %721 = vrot.lane.b32.xlu0 %v716, 127
        %v722 = vpop.permute.xlu0 %721
        %v725 = vadd.f32 %v711, %v720
        %v726 = vadd.f32 %v712, %v722
        %s727 = sld [smem:[#allocation2 + $0x26]]
        %v728 = vstv %s727
        %v729 = vmul.f32 %v728, %v279
        %v730 = vmul.f32 %v728, %v280
        %733 = vrot.lane.b32.xlu0 %v729, 126
        %v734 = vpop.permute.xlu0 %733
        %735 = vrot.lane.b32.xlu0 %v730, 126
        %v736 = vpop.permute.xlu0 %735
        %v739 = vadd.f32 %v725, %v734
        %v740 = vadd.f32 %v726, %v736
        %s741 = sld [smem:[#allocation2 + $0x27]]
        %v742 = vstv %s741
        %v743 = vmul.f32 %v742, %v317
        %v744 = vmul.f32 %v742, %v318
        %v745 = vadd.f32 %v739, %v743
        %v746 = vadd.f32 %v740, %v744
        %s747 = sld [smem:[#allocation2 + $0x28]]
        %v748 = vstv %s747
        %v749 = vmul.f32 %v748, %v317
        %v750 = vmul.f32 %v748, %v318
        %753 = vrot.lane.b32.xlu0 %v749, 127
        %v754 = vpop.permute.xlu0 %753
        %755 = vrot.lane.b32.xlu0 %v750, 127
        %v756 = vpop.permute.xlu0 %755
        %v759 = vadd.f32 %v745, %v754
        %v760 = vadd.f32 %v746, %v756
        %s761 = sld [smem:[#allocation2 + $0x29]]
        %v762 = vstv %s761
        %v763 = vmul.f32 %v762, %v317
        %v764 = vmul.f32 %v762, %v318
        %767 = vrot.lane.b32.xlu0 %v763, 126
        %v768 = vpop.permute.xlu0 %767
        %769 = vrot.lane.b32.xlu0 %v764, 126
        %v770 = vpop.permute.xlu0 %769
        %v773 = vadd.f32 %v759, %v768
        %v774 = vadd.f32 %v760, %v770
        %s775 = sld [smem:[#allocation2 + $0x2a]]
        %v776 = vstv %s775
        %v777 = vmul.f32 %v776, %v665
        %v778 = vmul.f32 %v776, %v666
        %v779 = vadd.f32 %v773, %v777
        %v780 = vadd.f32 %v774, %v778
        %s781 = sld [smem:[#allocation2 + $0x2b]]
        %v782 = vstv %s781
        %v783 = vmul.f32 %v782, %v665
        %v784 = vmul.f32 %v782, %v666
        %787 = vrot.lane.b32.xlu0 %v783, 127
        %v788 = vpop.permute.xlu0 %787
        %789 = vrot.lane.b32.xlu0 %v784, 127
        %v790 = vpop.permute.xlu0 %789
        %v793 = vadd.f32 %v779, %v788
        %v794 = vadd.f32 %v780, %v790
        %s795 = sld [smem:[#allocation2 + $0x2c]]
        %v796 = vstv %s795
        %v797 = vmul.f32 %v796, %v665
        %v798 = vmul.f32 %v796, %v666
        %801 = vrot.lane.b32.xlu0 %v797, 126
        %v802 = vpop.permute.xlu0 %801
        %803 = vrot.lane.b32.xlu0 %v798, 126
        %v804 = vpop.permute.xlu0 %803
        %v807 = vadd.f32 %v793, %v802
        %v808 = vadd.f32 %v794, %v804
        %811 = vrot.lane.b32.xlu0 %v807, 127
        %v812 = vpop.permute.xlu0 %811
        %813 = vrot.lane.b32.xlu0 %v808, 127
        %v814 = vpop.permute.xlu0 %813
        %v817 = vadd.f32 %v703, %v812
        %v818 = vadd.f32 %v704, %v814
        %s819 = sld [smem:[#allocation4 + $0x5]]
        %v820 = vstv %s819
        %s821 = sld [smem:[#allocation2 + $0x2d]]
        %v822 = vstv %s821
        %v823 = vmul.f32 %v822, %v279
        %v824 = vmul.f32 %v822, %v280
        %v825 = vadd.f32 %v820, %v823
        %v826 = vadd.f32 %v820, %v824
        %s827 = sld [smem:[#allocation2 + $0x2e]]
        %v828 = vstv %s827
        %v829 = vmul.f32 %v828, %v279
        %v830 = vmul.f32 %v828, %v280
        %833 = vrot.lane.b32.xlu0 %v829, 127
        %v834 = vpop.permute.xlu0 %833
        %835 = vrot.lane.b32.xlu0 %v830, 127
        %v836 = vpop.permute.xlu0 %835
        %v839 = vadd.f32 %v825, %v834
        %v840 = vadd.f32 %v826, %v836
        %s841 = sld [smem:[#allocation2 + $0x2f]]
        %v842 = vstv %s841
        %v843 = vmul.f32 %v842, %v279
        %v844 = vmul.f32 %v842, %v280
        %847 = vrot.lane.b32.xlu0 %v843, 126
        %v848 = vpop.permute.xlu0 %847
        %849 = vrot.lane.b32.xlu0 %v844, 126
        %v850 = vpop.permute.xlu0 %849
        %v853 = vadd.f32 %v839, %v848
        %v854 = vadd.f32 %v840, %v850
        %s855 = sld [smem:[#allocation2 + $0x30]]
        %v856 = vstv %s855
        %v857 = vmul.f32 %v856, %v317
        %v858 = vmul.f32 %v856, %v318
        %v859 = vadd.f32 %v853, %v857
        %v860 = vadd.f32 %v854, %v858
        %s861 = sld [smem:[#allocation2 + $0x31]]
        %v862 = vstv %s861
        %v863 = vmul.f32 %v862, %v317
        %v864 = vmul.f32 %v862, %v318
        %867 = vrot.lane.b32.xlu0 %v863, 127
        %v868 = vpop.permute.xlu0 %867
        %869 = vrot.lane.b32.xlu0 %v864, 127
        %v870 = vpop.permute.xlu0 %869
        %v873 = vadd.f32 %v859, %v868
        %v874 = vadd.f32 %v860, %v870
        %s875 = sld [smem:[#allocation2 + $0x32]]
        %v876 = vstv %s875
        %v877 = vmul.f32 %v876, %v317
        %v878 = vmul.f32 %v876, %v318
        %881 = vrot.lane.b32.xlu0 %v877, 126
        %v882 = vpop.permute.xlu0 %881
        %883 = vrot.lane.b32.xlu0 %v878, 126
        %v884 = vpop.permute.xlu0 %883
        %v887 = vadd.f32 %v873, %v882
        %v888 = vadd.f32 %v874, %v884
        %s889 = sld [smem:[#allocation2 + $0x33]]
        %v890 = vstv %s889
        %v891 = vmul.f32 %v890, %v665
        %v892 = vmul.f32 %v890, %v666
        %v893 = vadd.f32 %v887, %v891
        %v894 = vadd.f32 %v888, %v892
        %s895 = sld [smem:[#allocation2 + $0x34]]
        %v896 = vstv %s895
        %v897 = vmul.f32 %v896, %v665
        %v898 = vmul.f32 %v896, %v666
        %901 = vrot.lane.b32.xlu0 %v897, 127
        %v902 = vpop.permute.xlu0 %901
        %903 = vrot.lane.b32.xlu0 %v898, 127
        %v904 = vpop.permute.xlu0 %903
        %v907 = vadd.f32 %v893, %v902
        %v908 = vadd.f32 %v894, %v904
        %s909 = sld [smem:[#allocation2 + $0x35]]
        %v910 = vstv %s909
        %v911 = vmul.f32 %v910, %v665
        %v912 = vmul.f32 %v910, %v666
        %915 = vrot.lane.b32.xlu0 %v911, 126
        %v916 = vpop.permute.xlu0 %915
        %917 = vrot.lane.b32.xlu0 %v912, 126
        %v918 = vpop.permute.xlu0 %917
        %v921 = vadd.f32 %v907, %v916
        %v922 = vadd.f32 %v908, %v918
        %925 = vrot.lane.b32.xlu0 %v921, 126
        %v926 = vpop.permute.xlu0 %925
        %927 = vrot.lane.b32.xlu0 %v922, 126
        %v928 = vpop.permute.xlu0 %927
        %v931 = vsel %vm235, %v926, 0.0
        %v932 = vsel %vm235, %v928, 0.0
        %v933 = vadd.f32 %v817, %v931
        %v934 = vadd.f32 %v818, %v932
        %s935 = sld [smem:[#allocation4 + $0x6]]
        %v936 = vstv %s935
        %s937 = sld [smem:[#allocation2 + $0x36]]
        %v938 = vstv %s937
        %v939 = vmul.f32 %v938, %v317
        %v940 = vmul.f32 %v938, %v318
        %v941 = vadd.f32 %v936, %v939
        %v942 = vadd.f32 %v936, %v940
        %s943 = sld [smem:[#allocation2 + $0x37]]
        %v944 = vstv %s943
        %v945 = vmul.f32 %v944, %v317
        %v946 = vmul.f32 %v944, %v318
        %949 = vrot.lane.b32.xlu0 %v945, 127
        %v950 = vpop.permute.xlu0 %949
        %951 = vrot.lane.b32.xlu0 %v946, 127
        %v952 = vpop.permute.xlu0 %951
        %v955 = vadd.f32 %v941, %v950
        %v956 = vadd.f32 %v942, %v952
        %s957 = sld [smem:[#allocation2 + $0x38]]
        %v958 = vstv %s957
        %v959 = vmul.f32 %v958, %v317
        %v960 = vmul.f32 %v958, %v318
        %963 = vrot.lane.b32.xlu0 %v959, 126
        %v964 = vpop.permute.xlu0 %963
        %965 = vrot.lane.b32.xlu0 %v960, 126
        %v966 = vpop.permute.xlu0 %965
        %v969 = vadd.f32 %v955, %v964
        %v970 = vadd.f32 %v956, %v966
        %s971 = sld [smem:[#allocation2 + $0x39]]
        %v972 = vstv %s971
        %v973 = vmul.f32 %v972, %v665
        %v974 = vmul.f32 %v972, %v666
        %v975 = vadd.f32 %v969, %v973
        %v976 = vadd.f32 %v970, %v974
        %s977 = sld [smem:[#allocation2 + $0x3a]]
        %v978 = vstv %s977
        %v979 = vmul.f32 %v978, %v665
        %v980 = vmul.f32 %v978, %v666
        %983 = vrot.lane.b32.xlu0 %v979, 127
        %v984 = vpop.permute.xlu0 %983
        %985 = vrot.lane.b32.xlu0 %v980, 127
        %v986 = vpop.permute.xlu0 %985
        %v989 = vadd.f32 %v975, %v984
        %v990 = vadd.f32 %v976, %v986
        %s991 = sld [smem:[#allocation2 + $0x3b]]
        %v992 = vstv %s991
        %v993 = vmul.f32 %v992, %v665
        %v994 = vmul.f32 %v992, %v666
        %997 = vrot.lane.b32.xlu0 %v993, 126
        %v998 = vpop.permute.xlu0 %997
        %999 = vrot.lane.b32.xlu0 %v994, 126
        %v1000 = vpop.permute.xlu0 %999
        %v1003 = vadd.f32 %v989, %v998
        %v1004 = vadd.f32 %v990, %v1000
        %s1005 = sadd.s32 %s221, 4
        %s1006 = scalar_lea.vmem %s210, %s1005
        %v1007 = vld [vmem:[%s1006] sm:$0xff]
        %v1008 = vld [vmem:[%s1006 + $0x8] sm:$0xff]
        %s1009 = sld [smem:[#allocation2 + $0x3c]]
        %v1010 = vstv %s1009
        %v1011 = vmul.f32 %v1010, %v1007
        %v1012 = vmul.f32 %v1010, %v1008
        %v1013 = vadd.f32 %v1003, %v1011
        %v1014 = vadd.f32 %v1004, %v1012
        %s1015 = sld [smem:[#allocation2 + $0x3d]]
        %v1016 = vstv %s1015
        %v1017 = vmul.f32 %v1016, %v1007
        %v1018 = vmul.f32 %v1016, %v1008
        %1021 = vrot.lane.b32.xlu0 %v1017, 127
        %v1022 = vpop.permute.xlu0 %1021
        %1023 = vrot.lane.b32.xlu0 %v1018, 127
        %v1024 = vpop.permute.xlu0 %1023
        %v1027 = vadd.f32 %v1013, %v1022
        %v1028 = vadd.f32 %v1014, %v1024
        %s1029 = sld [smem:[#allocation2 + $0x3e]]
        %v1030 = vstv %s1029
        %v1031 = vmul.f32 %v1030, %v1007
        %v1032 = vmul.f32 %v1030, %v1008
        %1035 = vrot.lane.b32.xlu0 %v1031, 126
        %v1036 = vpop.permute.xlu0 %1035
        %1037 = vrot.lane.b32.xlu0 %v1032, 126
        %v1038 = vpop.permute.xlu0 %1037
        %v1041 = vadd.f32 %v1027, %v1036
        %v1042 = vadd.f32 %v1028, %v1038
        %vm1043 = vmand %vm232, %vm234
        %vm1044 = vmand %vm233, %vm234
        %v1045 = vsel %vm1043, %v1041, 0.0
        %v1046 = vsel %vm1044, %v1042, 0.0
        %v1047 = vadd.f32 %v933, %v1045
        %v1048 = vadd.f32 %v934, %v1046
        %s1049 = sld [smem:[#allocation4 + $0x7]]
        %v1050 = vstv %s1049
        %s1051 = sld [smem:[#allocation2 + $0x3f]]
        %v1052 = vstv %s1051
        %v1053 = vmul.f32 %v1052, %v317
        %v1054 = vmul.f32 %v1052, %v318
        %v1055 = vadd.f32 %v1050, %v1053
        %v1056 = vadd.f32 %v1050, %v1054
        %s1057 = sld [smem:[#allocation2 + $0x40]]
        %v1058 = vstv %s1057
        %v1059 = vmul.f32 %v1058, %v317
        %v1060 = vmul.f32 %v1058, %v318
        %1063 = vrot.lane.b32.xlu0 %v1059, 127
        %v1064 = vpop.permute.xlu0 %1063
        %1065 = vrot.lane.b32.xlu0 %v1060, 127
        %v1066 = vpop.permute.xlu0 %1065
        %v1069 = vadd.f32 %v1055, %v1064
        %v1070 = vadd.f32 %v1056, %v1066
        %s1071 = sld [smem:[#allocation2 + $0x41]]
        %v1072 = vstv %s1071
        %v1073 = vmul.f32 %v1072, %v317
        %v1074 = vmul.f32 %v1072, %v318
        %1077 = vrot.lane.b32.xlu0 %v1073, 126
        %v1078 = vpop.permute.xlu0 %1077
        %1079 = vrot.lane.b32.xlu0 %v1074, 126
        %v1080 = vpop.permute.xlu0 %1079
        %v1083 = vadd.f32 %v1069, %v1078
        %v1084 = vadd.f32 %v1070, %v1080
        %s1085 = sld [smem:[#allocation2 + $0x42]]
        %v1086 = vstv %s1085
        %v1087 = vmul.f32 %v1086, %v665
        %v1088 = vmul.f32 %v1086, %v666
        %v1089 = vadd.f32 %v1083, %v1087
        %v1090 = vadd.f32 %v1084, %v1088
        %s1091 = sld [smem:[#allocation2 + $0x43]]
        %v1092 = vstv %s1091
        %v1093 = vmul.f32 %v1092, %v665
        %v1094 = vmul.f32 %v1092, %v666
        %1097 = vrot.lane.b32.xlu0 %v1093, 127
        %v1098 = vpop.permute.xlu0 %1097
        %1099 = vrot.lane.b32.xlu0 %v1094, 127
        %v1100 = vpop.permute.xlu0 %1099
        %v1103 = vadd.f32 %v1089, %v1098
        %v1104 = vadd.f32 %v1090, %v1100
        %s1105 = sld [smem:[#allocation2 + $0x44]]
        %v1106 = vstv %s1105
        %v1107 = vmul.f32 %v1106, %v665
        %v1108 = vmul.f32 %v1106, %v666
        %1111 = vrot.lane.b32.xlu0 %v1107, 126
        %v1112 = vpop.permute.xlu0 %1111
        %1113 = vrot.lane.b32.xlu0 %v1108, 126
        %v1114 = vpop.permute.xlu0 %1113
        %v1117 = vadd.f32 %v1103, %v1112
        %v1118 = vadd.f32 %v1104, %v1114
        %s1119 = sld [smem:[#allocation2 + $0x45]]
        %v1120 = vstv %s1119
        %v1121 = vmul.f32 %v1120, %v1007
        %v1122 = vmul.f32 %v1120, %v1008
        %v1123 = vadd.f32 %v1117, %v1121
        %v1124 = vadd.f32 %v1118, %v1122
        %s1125 = sld [smem:[#allocation2 + $0x46]]
        %v1126 = vstv %s1125
        %v1127 = vmul.f32 %v1126, %v1007
        %v1128 = vmul.f32 %v1126, %v1008
        %1131 = vrot.lane.b32.xlu0 %v1127, 127
        %v1132 = vpop.permute.xlu0 %1131
        %1133 = vrot.lane.b32.xlu0 %v1128, 127
        %v1134 = vpop.permute.xlu0 %1133
        %v1137 = vadd.f32 %v1123, %v1132
        %v1138 = vadd.f32 %v1124, %v1134
        %s1139 = sld [smem:[#allocation2 + $0x47]]
        %v1140 = vstv %s1139
        %v1141 = vmul.f32 %v1140, %v1007
        %v1142 = vmul.f32 %v1140, %v1008
        %1145 = vrot.lane.b32.xlu0 %v1141, 126
        %v1146 = vpop.permute.xlu0 %1145
        %1147 = vrot.lane.b32.xlu0 %v1142, 126
        %v1148 = vpop.permute.xlu0 %1147
        %v1151 = vadd.f32 %v1137, %v1146
        %v1152 = vadd.f32 %v1138, %v1148
        %v1153 = vsel %vm232, %v1151, 0.0
        %v1154 = vsel %vm233, %v1152, 0.0
        %1157 = vrot.lane.b32.xlu0 %v1153, 127
        %v1158 = vpop.permute.xlu0 %1157
        %1159 = vrot.lane.b32.xlu0 %v1154, 127
        %v1160 = vpop.permute.xlu0 %1159
        %v1163 = vadd.f32 %v1047, %v1158
        %v1164 = vadd.f32 %v1048, %v1160
        %s1165 = sld [smem:[#allocation4 + $0x8]]
        %v1166 = vstv %s1165
        %s1167 = sld [smem:[#allocation2 + $0x48]]
        %v1168 = vstv %s1167
        %v1169 = vmul.f32 %v1168, %v317
        %v1170 = vmul.f32 %v1168, %v318
        %v1171 = vadd.f32 %v1166, %v1169
        %v1172 = vadd.f32 %v1166, %v1170
        %s1173 = sld [smem:[#allocation2 + $0x49]]
        %v1174 = vstv %s1173
        %v1175 = vmul.f32 %v1174, %v317
        %v1176 = vmul.f32 %v1174, %v318
        %1179 = vrot.lane.b32.xlu0 %v1175, 127
        %v1180 = vpop.permute.xlu0 %1179
        %1181 = vrot.lane.b32.xlu0 %v1176, 127
        %v1182 = vpop.permute.xlu0 %1181
        %v1185 = vadd.f32 %v1171, %v1180
        %v1186 = vadd.f32 %v1172, %v1182
        %s1187 = sld [smem:[#allocation2 + $0x4a]]
        %v1188 = vstv %s1187
        %v1189 = vmul.f32 %v1188, %v317
        %v1190 = vmul.f32 %v1188, %v318
        %1193 = vrot.lane.b32.xlu0 %v1189, 126
        %v1194 = vpop.permute.xlu0 %1193
        %1195 = vrot.lane.b32.xlu0 %v1190, 126
        %v1196 = vpop.permute.xlu0 %1195
        %v1199 = vadd.f32 %v1185, %v1194
        %v1200 = vadd.f32 %v1186, %v1196
        %s1201 = sld [smem:[#allocation2 + $0x4b]]
        %v1202 = vstv %s1201
        %v1203 = vmul.f32 %v1202, %v665
        %v1204 = vmul.f32 %v1202, %v666
        %v1205 = vadd.f32 %v1199, %v1203
        %v1206 = vadd.f32 %v1200, %v1204
        %s1207 = sld [smem:[#allocation2 + $0x4c]]
        %v1208 = vstv %s1207
        %v1209 = vmul.f32 %v1208, %v665
        %v1210 = vmul.f32 %v1208, %v666
        %1213 = vrot.lane.b32.xlu0 %v1209, 127
        %v1214 = vpop.permute.xlu0 %1213
        %1215 = vrot.lane.b32.xlu0 %v1210, 127
        %v1216 = vpop.permute.xlu0 %1215
        %v1219 = vadd.f32 %v1205, %v1214
        %v1220 = vadd.f32 %v1206, %v1216
        %s1221 = sld [smem:[#allocation2 + $0x4d]]
        %v1222 = vstv %s1221
        %v1223 = vmul.f32 %v1222, %v665
        %v1224 = vmul.f32 %v1222, %v666
        %1227 = vrot.lane.b32.xlu0 %v1223, 126
        %v1228 = vpop.permute.xlu0 %1227
        %1229 = vrot.lane.b32.xlu0 %v1224, 126
        %v1230 = vpop.permute.xlu0 %1229
        %v1233 = vadd.f32 %v1219, %v1228
        %v1234 = vadd.f32 %v1220, %v1230
        %s1235 = sld [smem:[#allocation2 + $0x4e]]
        %v1236 = vstv %s1235
        %v1237 = vmul.f32 %v1236, %v1007
        %v1238 = vmul.f32 %v1236, %v1008
        %v1239 = vadd.f32 %v1233, %v1237
        %v1240 = vadd.f32 %v1234, %v1238
        %s1241 = sld [smem:[#allocation2 + $0x4f]]
        %v1242 = vstv %s1241
        %v1243 = vmul.f32 %v1242, %v1007
        %v1244 = vmul.f32 %v1242, %v1008
        %1247 = vrot.lane.b32.xlu0 %v1243, 127
        %v1248 = vpop.permute.xlu0 %1247
        %1249 = vrot.lane.b32.xlu0 %v1244, 127
        %v1250 = vpop.permute.xlu0 %1249
        %v1253 = vadd.f32 %v1239, %v1248
        %v1254 = vadd.f32 %v1240, %v1250
        %s1255 = sld [smem:[#allocation2 + $0x50]]
        %v1256 = vstv %s1255
        %v1257 = vmul.f32 %v1256, %v1007
        %v1258 = vmul.f32 %v1256, %v1008
        %1261 = vrot.lane.b32.xlu0 %v1257, 126
        %v1262 = vpop.permute.xlu0 %1261
        %1263 = vrot.lane.b32.xlu0 %v1258, 126
        %v1264 = vpop.permute.xlu0 %1263
        %v1267 = vadd.f32 %v1253, %v1262
        %v1268 = vadd.f32 %v1254, %v1264
        %vm1269 = vmand %vm232, %vm235
        %vm1270 = vmand %vm233, %vm235
        %1273 = vrot.lane.b32.xlu0 %v1267, 126
        %v1274 = vpop.permute.xlu0 %1273
        %1275 = vrot.lane.b32.xlu0 %v1268, 126
        %v1276 = vpop.permute.xlu0 %1275
        %v1279 = vsel %vm1269, %v1274, 0.0
        %v1280 = vsel %vm1270, %v1276, 0.0
        %v1281 = vadd.f32 %v1163, %v1279
        %v1282 = vadd.f32 %v1164, %v1280
        %v1283 = vxor.u32 %v1281, 2147483648
        %v1284 = vxor.u32 %v1282, 2147483648
        %v1285 = vmul.f32 %v1283, 1.442695
        %v1286 = vpow.pop %v1285
        %v1287 = vmul.f32 %v1284, 1.442695
        %v1288 = vpow.pop %v1287
        %v1289 = vadd.f32 %v1286, 1.0
        %v1290 = vadd.f32 %v1288, 1.0
        %v1291 = vrcp.pop %v1289
        %v1292 = vmul.f32 %v1289, %v1291
        %v1293 = vsub.f32 1.0, %v1292
        %v1294 = vmul.f32 %v1291, %v1293
        %v1295 = vadd.f32 %v1291, %v1294
        %vm1296 = vweird.f32 %v1289
        %vm1297 = vweird.f32 %v1291
        %vm1298 = vmor %vm1296, %vm1297
        %v1299 = vsel %vm1298, %v1291, %v1295
        %v1300 = vand.u32 2147483647, %v1289
        %vm1301 = vcmp.eq.f32.partialorder %v1300, 8.507059e+37
        %v1302 = vand.u32 %v1289, 2147483648
        %v1303 = vor.u32 1.1754944e-38, %v1302
        %v1304 = vsel %vm1301, %v1303, %v1299
        %v1305 = vmul.f32 1.0, %v1304
        %v1306 = vrcp.pop %v1290
        %v1307 = vmul.f32 %v1290, %v1306
        %v1308 = vsub.f32 1.0, %v1307
        %v1309 = vmul.f32 %v1306, %v1308
        %v1310 = vadd.f32 %v1306, %v1309
        %vm1311 = vweird.f32 %v1290
        %vm1312 = vweird.f32 %v1306
        %vm1313 = vmor %vm1311, %vm1312
        %v1314 = vsel %vm1313, %v1306, %v1310
        %v1315 = vand.u32 2147483647, %v1290
        %vm1316 = vcmp.eq.f32.partialorder %v1315, 8.507059e+37
        %v1317 = vand.u32 %v1290, 2147483648
        %v1318 = vor.u32 1.1754944e-38, %v1317
        %v1319 = vsel %vm1316, %v1318, %v1314
        %v1320 = vmul.f32 1.0, %v1319
        %vm1321 = vcmask 130048
        %1322 = vst.msk [vmem:[%s219] sm:$0xff] %vm1321, %v1305
        %1323 = vst.msk [vmem:[%s219 + $0x8] sm:$0xff] %vm1321, %v1320
        %s1324 = smul.u32 2, %s21
        %p1325 = scmp.lt.s32.totalorder %s20, 1
        %s1326 = scalar_select %p1325, %s20, 1
        %p1327 = scmp.lt.s32.totalorder %s1324, 1
        %s1328 = scalar_select %p1327, %s1324, 1
        %s1329 = smul.addr %s1326, 2
        %s1330 = sadd.s32 %s1328, %s1329
        %s1331 = smul.addr %s1330, 8
        %s1332 = scalar_lea.vmem %s3, %s1331
        // Predicated region
        $region41: #{land_use_mask_forward.2} parent=31 // pred_check
          %p1333 = pneg %p116
        $region42: #{land_use_mask_forward.2} parent=31 // pred_check_branch
          %1335 = sbr.rel (%p1333) target = $region44
        $region43: #{land_use_mask_forward.2} parent=31 // pred_region
          %s1336 = smul.u32 2, %s21
        $region44: #{land_use_mask_forward.2} parent=31 // pred_fallthru
          _
      $region32: #{land_use_mask_forward.2} parent=5 // pred_fallthru
        _
      %p1337 = scmp.le.s32.totalorder 2, %s11
      // Predicated region
      $region45: #{land_use_mask_forward.2} parent=5 // pred_check
        %p1338 = pneg %p1337
      $region46: #{land_use_mask_forward.2} parent=5 // pred_check_branch
        %1340 = sbr.rel (%p1338) target = $region48
      $region47: #{land_use_mask_forward.2} parent=5 // pred_region
        %s1341 = ssub.s32 %s11, 2
        // Predicated region
        $region49: #{land_use_mask_forward.2} parent=47 // pred_check
          %p1342 = pneg %p122
        $region50: #{land_use_mask_forward.2} parent=47 // pred_check_branch
          %1344 = sbr.rel (%p1342) target = $region52
        $region51: #{land_use_mask_forward.2} parent=47 // pred_region
          %s1345 = smul.u32 2, %s23
          %p1346 = scmp.lt.s32.totalorder %s22, 1
          %s1347 = scalar_select %p1346, %s22, 1
          %p1348 = scmp.lt.s32.totalorder %s1345, 1
          %s1349 = scalar_select %p1348, %s1345, 1
          %s1350 = smul.addr %s1347, 2
          %s1351 = sadd.s32 %s1349, %s1350
          %s1352 = smul.addr %s1351, 8
          %s1353 = scalar_lea.vmem %s3, %s1352
        $region52: #{land_use_mask_forward.2} parent=47 // pred_fallthru
          _
      $region48: #{land_use_mask_forward.2} parent=5 // pred_fallthru
        _
    $region6: #{land_use_mask_forward.2} parent=1 // loop_footer
      %s15 = sadd.s32 1, %s11
    $region7: #{land_use_mask_forward.2} parent=1 // loop_footer_branch
      %10 = sbr.rel target = $region3
    $region8: #{land_use_mask_forward.2} parent=1 // loop_exit
      _
    %1354 = vsyncpa [#allocation3], 1
    %s1355 = scalar_lea.sflag [#allocation3], 1
    %1356 = vsyncpa %s1355, 1
    %1357 = vsyncpa [#allocation5], 1

</llo_original>
